<compile_context>
chip_gen: v7x
topology: tpu7x:2x2x1
jax: 0.10.0
libtpu: 0.0.40
codegen_flags: <defaults>
</compile_context>

<pallas_src>
import functools

import jax
import jax.numpy as jnp
from jax.experimental import pallas as pl
from jax.experimental.pallas import tpu as pltpu


def _round_up(n, m):
    return (n + m - 1) // m * m


def _bias_layout(hidden, out_pad):
    """128-lane-aligned offsets of [b1 | b3 | out-bias(b4|b21|b22|0)] in the slab."""
    off_b1 = 0
    off_b3 = _round_up(off_b1 + hidden, 128)
    off_bo = _round_up(off_b3 + hidden, 128)
    total = off_bo + out_pad          # out_pad is already a multiple of 128
    return off_b1, off_b3, off_bo, total


def _exp(v, in_bf16):
    # Optional bf16 EUP path (v6e/v7x have a ~2x bf16 transcendental rate);
    # keep f32 by default for bit-level parity with the f32 reference.
    if in_bf16:
        return jnp.exp(v.astype(jnp.bfloat16)).astype(jnp.float32)
    return jnp.exp(v)


def _elu(v, exp_in_bf16=False):
    # nn.ELU(alpha=1.0).  Negative branch is clamped so the discarded side of
    # jnp.where never overflows.  exp(x)-1 (rather than expm1) keeps the
    # lowering on the known-supported EUP exp op; the near-zero precision delta
    # vs torch's expm1-based ELU is far below the 1e-4 comparison tolerance.
    return jnp.where(v > 0.0, v, _exp(jnp.minimum(v, 0.0), exp_in_bf16) - 1.0)


def _cvae_kernel(
    xc_ref, eps_ref,
    w1c_ref, wh_ref, w3z_ref, w4_ref, bias_ref,
    out_ref,
    *, x_dim, latent_dim, hidden, off_b1, off_b3, off_bo, exp_in_bf16,
):
    xc = xc_ref[...]          # [bb, x_dim + ctx_dim]
    eps = eps_ref[...]        # [bb, latent_dim]
    out_pad = out_ref.shape[1]

    # ---- one MXU stream over xc: [fc1 pre-act | fc3 ctx contribution] -------
    enc_dec = jnp.dot(xc, w1c_ref[...], preferred_element_type=jnp.float32)  # [bb, 2*hidden]

    # ---- encode: h1 = ELU(fc1([x, ctx])) ------------------------------------
    h1 = _elu(enc_dec[:, :hidden] + bias_ref[:, off_b1:off_b1 + hidden], exp_in_bf16)

    # ---- fused heads in packed-output layout ---------------------------------
    # heads_wide lanes: [b4-only | mu | logvar | 0...]; b4 is pre-added here so
    # the final packed store is just heads_wide + recon_wide.
    heads_wide = (
        jnp.dot(h1, wh_ref[...], preferred_element_type=jnp.float32)
        + bias_ref[:, off_bo:off_bo + out_pad]
    )
    mu = heads_wide[:, x_dim:x_dim + latent_dim]
    logvar = heads_wide[:, x_dim + latent_dim:x_dim + 2 * latent_dim]

    # ---- reparameterize: z = mu + eps * exp(0.5 * logvar) --------------------
    z = mu + eps * _exp(0.5 * logvar, exp_in_bf16)

    # ---- decode: fc4(ELU(fc3([z, ctx]))) --------------------------------------
    # ctx half of fc3 was already produced by the fused xc matmul (enc_dec[:, hidden:]).
    h3 = _elu(
        jnp.dot(z, w3z_ref[...], preferred_element_type=jnp.float32)
        + enc_dec[:, hidden:]
        + bias_ref[:, off_b3:off_b3 + hidden],
        exp_in_bf16,
    )
    # w4 is pre-widened to the packed-output layout (cols >= x_dim are zero, no bias).
    recon_wide = jnp.dot(h3, w4_ref[...], preferred_element_type=jnp.float32)

    # ---- single unmasked, lane-dense store: [recon | mu | logvar | 0 pad] -----
    out_ref[...] = recon_wide + heads_wide


def _cvae_jax(xc, eps, kp, x_dim, latent_dim, hidden, off_b1, off_b3, off_bo, out_pad):
    """Fused XLA path for tiny batches (same packed params, same math)."""
    bias = kp["bias"][0]
    enc_dec = xc @ kp["w1c"]
    h1 = jax.nn.elu(enc_dec[:, :hidden] + bias[off_b1:off_b1 + hidden])
    heads = h1 @ kp["wh"] + bias[off_bo:off_bo + out_pad]
    mu = heads[:, x_dim:x_dim + latent_dim]
    logvar = heads[:, x_dim + latent_dim:x_dim + 2 * latent_dim]
    z = mu + eps * jnp.exp(0.5 * logvar)
    h3 = jax.nn.elu(z @ kp["w3z"] + enc_dec[:, hidden:] + bias[off_b3:off_b3 + hidden])
    recon = h3 @ kp["w4"][:, :x_dim] + bias[off_bo:off_bo + x_dim]
    return recon, mu, logvar


def cvae_forward(x, ctx, eps, kparams, *, max_block_b=1024, min_pallas_batch=16,
                 exp_in_bf16=False):
    B, x_dim = x.shape
    ctx_dim = ctx.shape[1]
    latent_dim = eps.shape[1]
    hidden = kparams["w1c"].shape[1] // 2
    d_in = x_dim + ctx_dim
    out_pad = kparams["wh"].shape[1]                 # 128-lane-padded packed output width
    off_b1, off_b3, off_bo, _ = _bias_layout(hidden, out_pad)

    # Concatenate [x, ctx] once in the wrapper (cheap XLA concat).
    xc = jnp.concatenate([x, ctx], axis=-1)

    # Tiny batches: pallas_call launch + DMA setup dominates; XLA fused GEMMs win.
    if B < min_pallas_batch:
        return _cvae_jax(xc, eps, kparams, x_dim, latent_dim, hidden,
                         off_b1, off_b3, off_bo, out_pad)

    # Batch tiling: big sublane-aligned blocks; keep >= 2 grid blocks when B
    # allows so the "parallel" axis can shard across both TensorCores on v7x.
    b_aligned = _round_up(B, 8)
    if b_aligned >= 16:
        bb = min(max_block_b, _round_up((B + 1) // 2, 8))
    else:
        bb = b_aligned
    b_pad = _round_up(B, bb)
    if b_pad != B:
        # Padded rows see bias-only activations (finite), outputs discarded below.
        xc = jnp.pad(xc, ((0, b_pad - B), (0, 0)))
        eps = jnp.pad(eps, ((0, b_pad - B), (0, 0)))
    grid = (b_pad // bb,)

    def act_spec(d):
        return pl.BlockSpec((bb, d), lambda i: (i, 0))

    def resident_spec(arr):
        return pl.BlockSpec(arr.shape, lambda i: (0, 0))

    kernel = functools.partial(
        _cvae_kernel,
        x_dim=x_dim, latent_dim=latent_dim, hidden=hidden,
        off_b1=off_b1, off_b3=off_b3, off_bo=off_bo, exp_in_bf16=exp_in_bf16,
    )

    out = pl.pallas_call(
        kernel,
        out_shape=jax.ShapeDtypeStruct((b_pad, out_pad), jnp.float32),
        grid=grid,
        in_specs=[
            act_spec(d_in),                       # xc
            act_spec(latent_dim),                 # eps
            resident_spec(kparams["w1c"]),        # fused [fc1 | fc3-ctx] weight
            resident_spec(kparams["wh"]),         # fused mu/logvar head (packed-out layout)
            resident_spec(kparams["w3z"]),        # fc3 z-half
            resident_spec(kparams["w4"]),         # fc4 (packed-out layout)
            resident_spec(kparams["bias"]),       # bias slab
        ],
        out_specs=act_spec(out_pad),
        compiler_params=pltpu.CompilerParams(
            dimension_semantics=("parallel",),
            # Fits the fat batch blocks on v5e's 16 MiB scoped default; well
            # inside v7x's 64 MiB physical VMEM.
            vmem_limit_bytes=32 * 1024 * 1024,
        ),
    )(
        xc, eps,
        kparams["w1c"], kparams["wh"], kparams["w3z"], kparams["w4"], kparams["bias"],
    )

    recon = out[:B, :x_dim]
    mu = out[:B, x_dim:x_dim + latent_dim]
    logvar = out[:B, x_dim + latent_dim:x_dim + 2 * latent_dim]
    return recon, mu, logvar


def init_params(key, x_dim, context_dim, latent_dim, hidden=512):
    """Deterministic synthetic init (PyTorch Linear layout, stored transposed)."""
    ks = jax.random.split(key, 5)

    def lin(k, fan_in, fan_out):
        bound = 1.0 / jnp.sqrt(fan_in)
        kw, kb = jax.random.split(k)
        w = jax.random.uniform(kw, (fan_in, fan_out), jnp.float32, -bound, bound)
        b = jax.random.uniform(kb, (fan_out,), jnp.float32, -bound, bound)
        return w, b

    w1, b1 = lin(ks[0], x_dim + context_dim, hidden)            # fc1
    w21, b21 = lin(ks[1], hidden, latent_dim)                   # fc21 (mu)
    w22, b22 = lin(ks[2], hidden, latent_dim)                   # fc22 (logvar)
    w3, b3 = lin(ks[3], latent_dim + context_dim, hidden)       # fc3
    w4, b4 = lin(ks[4], hidden, x_dim)                          # fc4
    return dict(w1=w1, b1=b1, w21=w21, b21=b21, w22=w22, b22=b22,
                w3=w3, b3=b3, w4=w4, b4=b4)


def pack_params(p, x_dim, context_dim, latent_dim):
    """Fuse / pack PyTorch-style params into the kernel operand layout."""
    hidden = p["w1"].shape[1]
    d_in = x_dim + context_dim
    out_pad = _round_up(x_dim + 2 * latent_dim, 128)

    # fc3's ctx half as a zero-row-padded weight that consumes [x, ctx] directly,
    # fused column-wise with fc1 so xc streams through the MXU exactly once.
    w3c = jnp.zeros((d_in, hidden), jnp.float32).at[x_dim:].set(p["w3"][latent_dim:])
    w1c = jnp.concatenate([p["w1"], w3c], axis=1)                # (d_in, 2*hidden)

    # mu/logvar head placed at lanes [x_dim, x_dim+2*latent) of the 128-wide
    # packed-output layout (lanes [0, x_dim) belong to recon).
    wh = jnp.zeros((hidden, out_pad), jnp.float32)
    wh = wh.at[:, x_dim:x_dim + latent_dim].set(p["w21"])
    wh = wh.at[:, x_dim + latent_dim:x_dim + 2 * latent_dim].set(p["w22"])

    # fc4 widened to the packed-output layout (columns >= x_dim are zero).
    w4 = jnp.zeros((hidden, out_pad), jnp.float32).at[:, :x_dim].set(p["w4"])

    # fc3 z-half.
    w3z = p["w3"][:latent_dim]                                    # (latent, hidden)

    # All biases in one 128-lane-aligned slab -> one DMA.  The output bias is
    # already in packed-output lane order: [b4 | b21 | b22 | 0 ...].
    off_b1, off_b3, off_bo, total = _bias_layout(hidden, out_pad)
    bias = jnp.zeros((1, total), jnp.float32)
    bias = bias.at[0, off_b1:off_b1 + hidden].set(p["b1"])
    bias = bias.at[0, off_b3:off_b3 + hidden].set(p["b3"])
    bias = bias.at[0, off_bo:off_bo + x_dim].set(p["b4"])
    bias = bias.at[0, off_bo + x_dim:off_bo + x_dim + latent_dim].set(p["b21"])
    bias = bias.at[0, off_bo + x_dim + latent_dim:
                      off_bo + x_dim + 2 * latent_dim].set(p["b22"])

    return dict(w1c=w1c, wh=wh, w3z=w3z, w4=w4, bias=bias)


def cvae_reference(x, ctx, eps, p):
    """Pure-JAX reference mirroring the PyTorch forward (same eps)."""
    xc = jnp.concatenate([x, ctx], axis=-1)
    h1 = jax.nn.elu(xc @ p["w1"] + p["b1"])
    mu = h1 @ p["w21"] + p["b21"]
    logvar = h1 @ p["w22"] + p["b22"]
    z = mu + eps * jnp.exp(0.5 * logvar)
    zc = jnp.concatenate([z, ctx], axis=-1)
    h3 = jax.nn.elu(zc @ p["w3"] + p["b3"])
    recon = h3 @ p["w4"] + p["b4"]
    return recon, mu, logvar


if __name__ == "__main__":
    # Small shapes consistent with the module's forward; B=64 so the Pallas path
    # (not the tiny-batch XLA fallback) runs and the grid has >= 2 blocks.
    B, X_DIM, CTX_DIM, LATENT_DIM = 64, 16, 8, 4

    key = jax.random.PRNGKey(0)
    k_x, k_c, k_eps, k_p = jax.random.split(key, 4)

    x = jax.random.normal(k_x, (B, X_DIM), jnp.float32)
    ctx = jax.random.normal(k_c, (B, CTX_DIM), jnp.float32)
    # torch.randn_like(std) -> drawn outside the kernel, passed in.
    eps = jax.random.normal(k_eps, (B, LATENT_DIM), jnp.float32)

    params = init_params(k_p, X_DIM, CTX_DIM, LATENT_DIM)
    kparams = pack_params(params, X_DIM, CTX_DIM, LATENT_DIM)

    recon, mu, logvar = cvae_forward(x, ctx, eps, kparams)
    jax.block_until_ready((recon, mu, logvar))

    # Sanity check against pure-JAX reference.
    r_ref, mu_ref, lv_ref = cvae_reference(x, ctx, eps, params)
    assert jnp.allclose(recon, r_ref, atol=1e-4, rtol=1e-4)
    assert jnp.allclose(mu, mu_ref, atol=1e-4, rtol=1e-4)
    assert jnp.allclose(logvar, lv_ref, atol=1e-4, rtol=1e-4)

    print("KERNEL_OK")
</pallas_src>

<mosaic_0001>
module attributes {stable_mosaic.version = 11 : i64} {
  func.func @_cvae_kernel(%arg0: i32, %arg1: memref<32x24xf32, #tpu.memory_space<vmem>>, %arg2: memref<32x4xf32, #tpu.memory_space<vmem>>, %arg3: memref<24x1024xf32, #tpu.memory_space<vmem>>, %arg4: memref<512x128xf32, #tpu.memory_space<vmem>>, %arg5: memref<4x512xf32, #tpu.memory_space<vmem>>, %arg6: memref<512x128xf32, #tpu.memory_space<vmem>>, %arg7: memref<1x1152xf32, #tpu.memory_space<vmem>>, %arg8: memref<32x128xf32, #tpu.memory_space<vmem>>) attributes {dimension_semantics = [#tpu.dimension_semantics<parallel>], iteration_bounds = array<i64: 2>, scalar_prefetch = 0 : i64, scratch_operands = 0 : i64, tpu.core_type = #tpu.core_type<tc>, window_params = [{transform_indices = @transform_0, window_bounds = array<i64: 32, 24>}, {transform_indices = @transform_1, window_bounds = array<i64: 32, 4>}, {pipeline_mode = #tpu.pipeline_mode<synchronous>, transform_indices = @transform_2, window_bounds = array<i64: 24, 1024>}, {pipeline_mode = #tpu.pipeline_mode<synchronous>, transform_indices = @transform_3, window_bounds = array<i64: 512, 128>}, {pipeline_mode = #tpu.pipeline_mode<synchronous>, transform_indices = @transform_4, window_bounds = array<i64: 4, 512>}, {pipeline_mode = #tpu.pipeline_mode<synchronous>, transform_indices = @transform_5, window_bounds = array<i64: 512, 128>}, {pipeline_mode = #tpu.pipeline_mode<synchronous>, transform_indices = @transform_6, window_bounds = array<i64: 1, 1152>}, {transform_indices = @transform_7, window_bounds = array<i64: 32, 128>}]} {
    %c0 = arith.constant 0 : index
    %c0_0 = arith.constant 0 : index
    %0 = vector.load %arg1[%c0, %c0_0] : memref<32x24xf32, #tpu.memory_space<vmem>>, vector<32x24xf32>
    %c0_1 = arith.constant 0 : index
    %c0_2 = arith.constant 0 : index
    %1 = vector.load %arg2[%c0_1, %c0_2] : memref<32x4xf32, #tpu.memory_space<vmem>>, vector<32x4xf32>
    %c0_3 = arith.constant 0 : index
    %c0_4 = arith.constant 0 : index
    %2 = vector.load %arg3[%c0_3, %c0_4] : memref<24x1024xf32, #tpu.memory_space<vmem>>, vector<24x1024xf32>
    %cst = arith.constant dense<0.000000e+00> : vector<32x1024xf32>
    %3 = tpu.matmul %0, %2, %cst {dimension_numbers = #tpu.dot_dimension_numbers<[1], [0], [0], [1], [0, 0, 1, 1], [], []>} : vector<32x24xf32>, vector<24x1024xf32>, vector<32x1024xf32> -> vector<32x1024xf32>
    %4 = vector.extract_strided_slice %3 {offsets = [0, 0], sizes = [32, 512], strides = [1, 1]} : vector<32x1024xf32> to vector<32x512xf32>
    %c0_5 = arith.constant 0 : index
    %c0_6 = arith.constant 0 : index
    %5 = vector.load %arg7[%c0_5, %c0_6] : memref<1x1152xf32, #tpu.memory_space<vmem>>, vector<1x512xf32>
    %6 = vector.broadcast %5 : vector<1x512xf32> to vector<32x512xf32>
    %7 = arith.addf %4, %6 : vector<32x512xf32>
    %cst_7 = arith.constant 0.000000e+00 : f32
    %8 = vector.broadcast %cst_7 : f32 to vector<32x512xf32>
    %9 = arith.cmpf ogt, %7, %8 : vector<32x512xf32>
    %cst_8 = arith.constant 0.000000e+00 : f32
    %10 = vector.broadcast %cst_8 : f32 to vector<32x512xf32>
    %11 = arith.minimumf %7, %10 : vector<32x512xf32>
    %12 = math.exp %11 : vector<32x512xf32>
    %cst_9 = arith.constant 1.000000e+00 : f32
    %13 = vector.broadcast %cst_9 : f32 to vector<32x512xf32>
    %14 = arith.subf %12, %13 : vector<32x512xf32>
    %15 = arith.select %9, %7, %14 : vector<32x512xi1>, vector<32x512xf32>
    %c0_10 = arith.constant 0 : index
    %c0_11 = arith.constant 0 : index
    %16 = vector.load %arg4[%c0_10, %c0_11] : memref<512x128xf32, #tpu.memory_space<vmem>>, vector<512x128xf32>
    %cst_12 = arith.constant dense<0.000000e+00> : vector<32x128xf32>
    %17 = tpu.matmul %15, %16, %cst_12 {dimension_numbers = #tpu.dot_dimension_numbers<[1], [0], [0], [1], [0, 0, 1, 1], [], []>} : vector<32x512xf32>, vector<512x128xf32>, vector<32x128xf32> -> vector<32x128xf32>
    %c0_13 = arith.constant 0 : index
    %c1024 = arith.constant 1024 : index
    %18 = vector.load %arg7[%c0_13, %c1024] : memref<1x1152xf32, #tpu.memory_space<vmem>>, vector<1x128xf32>
    %19 = vector.broadcast %18 : vector<1x128xf32> to vector<32x128xf32>
    %20 = arith.addf %17, %19 : vector<32x128xf32>
    %21 = vector.extract_strided_slice %20 {offsets = [0, 16], sizes = [32, 4], strides = [1, 1]} : vector<32x128xf32> to vector<32x4xf32>
    %22 = vector.extract_strided_slice %20 {offsets = [0, 20], sizes = [32, 4], strides = [1, 1]} : vector<32x128xf32> to vector<32x4xf32>
    %cst_14 = arith.constant 5.000000e-01 : f32
    %23 = vector.broadcast %cst_14 : f32 to vector<32x4xf32>
    %24 = arith.mulf %23, %22 : vector<32x4xf32>
    %25 = math.exp %24 : vector<32x4xf32>
    %26 = arith.mulf %1, %25 : vector<32x4xf32>
    %27 = arith.addf %21, %26 : vector<32x4xf32>
    %c0_15 = arith.constant 0 : index
    %c0_16 = arith.constant 0 : index
    %28 = vector.load %arg5[%c0_15, %c0_16] : memref<4x512xf32, #tpu.memory_space<vmem>>, vector<4x512xf32>
    %cst_17 = arith.constant dense<0.000000e+00> : vector<32x512xf32>
    %29 = tpu.matmul %27, %28, %cst_17 {dimension_numbers = #tpu.dot_dimension_numbers<[1], [0], [0], [1], [0, 0, 1, 1], [], []>} : vector<32x4xf32>, vector<4x512xf32>, vector<32x512xf32> -> vector<32x512xf32>
    %30 = vector.extract_strided_slice %3 {offsets = [0, 512], sizes = [32, 512], strides = [1, 1]} : vector<32x1024xf32> to vector<32x512xf32>
    %31 = arith.addf %29, %30 : vector<32x512xf32>
    %c0_18 = arith.constant 0 : index
    %c512 = arith.constant 512 : index
    %32 = vector.load %arg7[%c0_18, %c512] : memref<1x1152xf32, #tpu.memory_space<vmem>>, vector<1x512xf32>
    %33 = vector.broadcast %32 : vector<1x512xf32> to vector<32x512xf32>
    %34 = arith.addf %31, %33 : vector<32x512xf32>
    %cst_19 = arith.constant 0.000000e+00 : f32
    %35 = vector.broadcast %cst_19 : f32 to vector<32x512xf32>
    %36 = arith.cmpf ogt, %34, %35 : vector<32x512xf32>
    %cst_20 = arith.constant 0.000000e+00 : f32
    %37 = vector.broadcast %cst_20 : f32 to vector<32x512xf32>
    %38 = arith.minimumf %34, %37 : vector<32x512xf32>
    %39 = math.exp %38 : vector<32x512xf32>
    %cst_21 = arith.constant 1.000000e+00 : f32
    %40 = vector.broadcast %cst_21 : f32 to vector<32x512xf32>
    %41 = arith.subf %39, %40 : vector<32x512xf32>
    %42 = arith.select %36, %34, %41 : vector<32x512xi1>, vector<32x512xf32>
    %c0_22 = arith.constant 0 : index
    %c0_23 = arith.constant 0 : index
    %43 = vector.load %arg6[%c0_22, %c0_23] : memref<512x128xf32, #tpu.memory_space<vmem>>, vector<512x128xf32>
    %cst_24 = arith.constant dense<0.000000e+00> : vector<32x128xf32>
    %44 = tpu.matmul %42, %43, %cst_24 {dimension_numbers = #tpu.dot_dimension_numbers<[1], [0], [0], [1], [0, 0, 1, 1], [], []>} : vector<32x512xf32>, vector<512x128xf32>, vector<32x128xf32> -> vector<32x128xf32>
    %45 = arith.addf %44, %20 : vector<32x128xf32>
    %c0_25 = arith.constant 0 : index
    %c0_26 = arith.constant 0 : index
    %46 = vector.load %arg8[%c0_25, %c0_26] : memref<32x128xf32, #tpu.memory_space<vmem>>, vector<32x128xf32>
    tpu.vector_store %arg8[%c0_25, %c0_26], %45 {strides = array<i32>} : memref<32x128xf32, #tpu.memory_space<vmem>>, vector<32x128xf32>,
    return
  }
  func.func @transform_0(%arg0: i32) -> (i32, i32) {
    %c0_i32 = arith.constant 0 : i32
    %c0_i32_0 = arith.constant 0 : i32
    return %arg0, %c0_i32 : i32, i32
  }
  func.func @transform_1(%arg0: i32) -> (i32, i32) {
    %c0_i32 = arith.constant 0 : i32
    %c0_i32_0 = arith.constant 0 : i32
    return %arg0, %c0_i32 : i32, i32
  }
  func.func @transform_2(%arg0: i32) -> (i32, i32) {
    %c0_i32 = arith.constant 0 : i32
    %c0_i32_0 = arith.constant 0 : i32
    %c0_i32_1 = arith.constant 0 : i32
    return %c0_i32, %c0_i32_0 : i32, i32
  }
  func.func @transform_3(%arg0: i32) -> (i32, i32) {
    %c0_i32 = arith.constant 0 : i32
    %c0_i32_0 = arith.constant 0 : i32
    %c0_i32_1 = arith.constant 0 : i32
    return %c0_i32, %c0_i32_0 : i32, i32
  }
  func.func @transform_4(%arg0: i32) -> (i32, i32) {
    %c0_i32 = arith.constant 0 : i32
    %c0_i32_0 = arith.constant 0 : i32
    %c0_i32_1 = arith.constant 0 : i32
    return %c0_i32, %c0_i32_0 : i32, i32
  }
  func.func @transform_5(%arg0: i32) -> (i32, i32) {
    %c0_i32 = arith.constant 0 : i32
    %c0_i32_0 = arith.constant 0 : i32
    %c0_i32_1 = arith.constant 0 : i32
    return %c0_i32, %c0_i32_0 : i32, i32
  }
  func.func @transform_6(%arg0: i32) -> (i32, i32) {
    %c0_i32 = arith.constant 0 : i32
    %c0_i32_0 = arith.constant 0 : i32
    %c0_i32_1 = arith.constant 0 : i32
    return %c0_i32, %c0_i32_0 : i32, i32
  }
  func.func @transform_7(%arg0: i32) -> (i32, i32) {
    %c0_i32 = arith.constant 0 : i32
    %c0_i32_0 = arith.constant 0 : i32
    return %arg0, %c0_i32 : i32, i32
  }
}

</mosaic_0001>

<llo_original>
// kernel: tpu_custom_call.1
$region0: #{tpu_custom_call.1}
  #allocation0 [shape = 'u32[]', space=smem, size = 0x4, offset = 0x4, fixed_abs, tag = 'smem constant byte address 0x4 - core index']
  #allocation1 [shape = 'u32[144,128]{1,0:T(1,128)}', space=vmem, size = 0x12000, scoped, tag = 'internal scratch']
  %s0 = inlined_call_operand.vmem [shape: f32[64,24], index: 0, kind: input, shape index: {}]
  %s1 = inlined_call_operand.vmem [shape: f32[64,4], index: 1, kind: input, shape index: {}]
  %s2 = inlined_call_operand.hbm [shape: f32[24,1024], index: 2, kind: input, shape index: {}]
  %s3 = inlined_call_operand.hbm [shape: f32[512,128], index: 3, kind: input, shape index: {}]
  %s4 = inlined_call_operand.vmem [shape: f32[4,512], index: 4, kind: input, shape index: {}]
  %s5 = inlined_call_operand.hbm [shape: f32[512,128], index: 5, kind: input, shape index: {}]
  %s6 = inlined_call_operand.vmem [shape: f32[1,1152], index: 6, kind: input, shape index: {}]
  %s7 = inlined_call_operand.hbm [shape: f32[64,128], index: 7, kind: output, shape index: {}]
  %s8 = sld [smem:[#allocation0]]
  $region73: #{tpu_custom_call.1} parent=0
    _
  %s10 = ssub.s32 1, %s8
  %s11 = scalar_select 0, %s10, %s8
  $region1: #{tpu_custom_call.1} parent=0
    #allocation2 [shape = 'u8[98304]{0}', space=vmem, size = 0x18000, scoped, tag = 'input window, operand 2, single buffered']
    #allocation3 [shape = 's32[2]{0}', space=sflag, size = 0x8, scoped, tag = 'scoped memory for tpu_custom_call.1']
    #allocation4 [shape = 's32[2]{0}', space=sflag, size = 0x8, scoped, tag = 'scoped memory for tpu_custom_call.1']
    #allocation5 [shape = 'u8[262144]{0}', space=vmem, size = 0x40000, scoped, tag = 'input window, operand 3, single buffered']
    #allocation6 [shape = 's32[1]{0}', space=sflag, size = 0x4, scoped, tag = 'scoped memory for tpu_custom_call.1']
    #allocation7 [shape = 'u8[262144]{0}', space=vmem, size = 0x40000, scoped, tag = 'input window, operand 5, single buffered']
    #allocation8 [shape = 'u8[32768]{0}', space=vmem, size = 0x8000, scoped, tag = 'output window, operand 0']
    %12 = vsyncpa [#allocation3], 0
    %13 = vsyncpa [#allocation6], 0
    %14 = vsyncpa [#allocation4], 0
    %s15 = scalar_lea.sflag [#allocation4], 1
    %16 = vsyncpa %s15, 0
    loop: start=0, step=1, limit=4
    $region2: #{tpu_custom_call.1} parent=1 // loop_pre_header
      _
    $region3: #{tpu_custom_call.1} parent=1 // loop_header
      %s18 = sphi 0, %s22
      %p19 = scmp.ge.s32.totalorder %s18, 4
      %s28 = sphi 0, %s30
      %s31 = sphi 0, %s28
      %s32 = sphi 0, %s31
      %s48 = sphi 0, %s32
      %s54 = sphi 0, %s56
      %s57 = sphi 0, %s54
      %s58 = sphi 0, %s57
      %s74 = sphi 0, %s58
      %s78 = sphi 0, %s78
      %s80 = sphi 0, %s78
      %s81 = sphi 0, %s80
      %s95 = sphi 0, %s81
      %s99 = sphi 0, %s99
      %s101 = sphi 0, %s99
      %s102 = sphi 0, %s101
      %s116 = sphi 0, %s102
      %s120 = sphi 0, %s120
      %s122 = sphi 0, %s120
      %s123 = sphi 0, %s122
      %s137 = sphi 0, %s123
      %s141 = sphi 0, %s141
      %s143 = sphi 0, %s141
      %s144 = sphi 0, %s143
      %s158 = sphi 0, %s144
      %s162 = sphi 0, %s162
      %s164 = sphi 0, %s162
      %s165 = sphi 0, %s164
      %s179 = sphi 0, %s165
      %s185 = sphi 0, %s187
      %s188 = sphi 0, %s185
      %s189 = sphi 0, %s188
      %s205 = sphi 0, %s189
    $region4: #{tpu_custom_call.1} parent=1 // loop_header_branch
      %21 = sbr.rel (%p19) target = $region8
    $region5: #{tpu_custom_call.1} parent=1 // loop_body
      %s23 = ssub.s32 %s18, 1
      %s24 = ssub.s32 %s18, 2
      %s25 = sadd.s32 %s18, 1
      %s26 = ssub.s32 %s18, %s25
      %p27 = scmp.eq.s32.totalorder %s26, 0
      %s29 = sadd.s32 %s28, 1
      %s30 = scalar_select %p27, %s28, %s29
      %p33 = pneg %p27
      %p34 = scmp.eq.s32.totalorder %s18, 1
      %p35 = por %p33, %p34
      %p36 = scmp.ne.s32.totalorder %s28, %s31
      %p37 = scmp.eq.s32.totalorder %s18, 0
      %p38 = por %p36, %p37
      %p39 = scmp.ne.s32.totalorder %s28, %s31
      %p40 = scmp.eq.s32.totalorder %s23, 1
      %p41 = por %p39, %p40
      %p42 = scmp.ne.s32.totalorder %s31, %s32
      %p43 = scmp.eq.s32.totalorder %s23, 0
      %p44 = por %p42, %p43
      %p45 = scmp.ne.s32.totalorder %s31, %s32
      %p46 = scmp.eq.s32.totalorder %s24, 1
      %p47 = por %p45, %p46
      %p49 = scmp.ne.s32.totalorder %s32, %s48
      %p50 = scmp.eq.s32.totalorder %s24, 0
      %p51 = por %p49, %p50
      %s52 = ssub.s32 %s18, %s25
      %p53 = scmp.eq.s32.totalorder %s52, 0
      %s55 = sadd.s32 %s54, 1
      %s56 = scalar_select %p53, %s54, %s55
      %p59 = pneg %p53
      %p60 = scmp.eq.s32.totalorder %s18, 1
      %p61 = por %p59, %p60
      %p62 = scmp.ne.s32.totalorder %s54, %s57
      %p63 = scmp.eq.s32.totalorder %s18, 0
      %p64 = por %p62, %p63
      %p65 = scmp.ne.s32.totalorder %s54, %s57
      %p66 = scmp.eq.s32.totalorder %s23, 1
      %p67 = por %p65, %p66
      %p68 = scmp.ne.s32.totalorder %s57, %s58
      %p69 = scmp.eq.s32.totalorder %s23, 0
      %p70 = por %p68, %p69
      %p71 = scmp.ne.s32.totalorder %s57, %s58
      %p72 = scmp.eq.s32.totalorder %s24, 1
      %p73 = por %p71, %p72
      %p75 = scmp.ne.s32.totalorder %s58, %s74
      %p76 = scmp.eq.s32.totalorder %s24, 0
      %p77 = por %p75, %p76
      %s79 = sadd.s32 %s78, 1
      %p82 = scmp.eq.s32.totalorder %s18, 1
      %p83 = scmp.ne.s32.totalorder %s78, %s80
      %p84 = scmp.eq.s32.totalorder %s18, 0
      %p85 = por %p83, %p84
      %p86 = scmp.ne.s32.totalorder %s78, %s80
      %p87 = scmp.eq.s32.totalorder %s23, 1
      %p88 = por %p86, %p87
      %p89 = scmp.ne.s32.totalorder %s80, %s81
      %p90 = scmp.eq.s32.totalorder %s23, 0
      %p91 = por %p89, %p90
      %p92 = scmp.ne.s32.totalorder %s80, %s81
      %p93 = scmp.eq.s32.totalorder %s24, 1
      %p94 = por %p92, %p93
      %p96 = scmp.ne.s32.totalorder %s81, %s95
      %p97 = scmp.eq.s32.totalorder %s24, 0
      %p98 = por %p96, %p97
      %s100 = sadd.s32 %s99, 1
      %p103 = scmp.eq.s32.totalorder %s18, 1
      %p104 = scmp.ne.s32.totalorder %s99, %s101
      %p105 = scmp.eq.s32.totalorder %s18, 0
      %p106 = por %p104, %p105
      %p107 = scmp.ne.s32.totalorder %s99, %s101
      %p108 = scmp.eq.s32.totalorder %s23, 1
      %p109 = por %p107, %p108
      %p110 = scmp.ne.s32.totalorder %s101, %s102
      %p111 = scmp.eq.s32.totalorder %s23, 0
      %p112 = por %p110, %p111
      %p113 = scmp.ne.s32.totalorder %s101, %s102
      %p114 = scmp.eq.s32.totalorder %s24, 1
      %p115 = por %p113, %p114
      %p117 = scmp.ne.s32.totalorder %s102, %s116
      %p118 = scmp.eq.s32.totalorder %s24, 0
      %p119 = por %p117, %p118
      %s121 = sadd.s32 %s120, 1
      %p124 = scmp.eq.s32.totalorder %s18, 1
      %p125 = scmp.ne.s32.totalorder %s120, %s122
      %p126 = scmp.eq.s32.totalorder %s18, 0
      %p127 = por %p125, %p126
      %p128 = scmp.ne.s32.totalorder %s120, %s122
      %p129 = scmp.eq.s32.totalorder %s23, 1
      %p130 = por %p128, %p129
      %p131 = scmp.ne.s32.totalorder %s122, %s123
      %p132 = scmp.eq.s32.totalorder %s23, 0
      %p133 = por %p131, %p132
      %p134 = scmp.ne.s32.totalorder %s122, %s123
      %p135 = scmp.eq.s32.totalorder %s24, 1
      %p136 = por %p134, %p135
      %p138 = scmp.ne.s32.totalorder %s123, %s137
      %p139 = scmp.eq.s32.totalorder %s24, 0
      %p140 = por %p138, %p139
      %s142 = sadd.s32 %s141, 1
      %p145 = scmp.eq.s32.totalorder %s18, 1
      %p146 = scmp.ne.s32.totalorder %s141, %s143
      %p147 = scmp.eq.s32.totalorder %s18, 0
      %p148 = por %p146, %p147
      %p149 = scmp.ne.s32.totalorder %s141, %s143
      %p150 = scmp.eq.s32.totalorder %s23, 1
      %p151 = por %p149, %p150
      %p152 = scmp.ne.s32.totalorder %s143, %s144
      %p153 = scmp.eq.s32.totalorder %s23, 0
      %p154 = por %p152, %p153
      %p155 = scmp.ne.s32.totalorder %s143, %s144
      %p156 = scmp.eq.s32.totalorder %s24, 1
      %p157 = por %p155, %p156
      %p159 = scmp.ne.s32.totalorder %s144, %s158
      %p160 = scmp.eq.s32.totalorder %s24, 0
      %p161 = por %p159, %p160
      %s163 = sadd.s32 %s162, 1
      %p166 = scmp.eq.s32.totalorder %s18, 1
      %p167 = scmp.ne.s32.totalorder %s162, %s164
      %p168 = scmp.eq.s32.totalorder %s18, 0
      %p169 = por %p167, %p168
      %p170 = scmp.ne.s32.totalorder %s162, %s164
      %p171 = scmp.eq.s32.totalorder %s23, 1
      %p172 = por %p170, %p171
      %p173 = scmp.ne.s32.totalorder %s164, %s165
      %p174 = scmp.eq.s32.totalorder %s23, 0
      %p175 = por %p173, %p174
      %p176 = scmp.ne.s32.totalorder %s164, %s165
      %p177 = scmp.eq.s32.totalorder %s24, 1
      %p178 = por %p176, %p177
      %p180 = scmp.ne.s32.totalorder %s165, %s179
      %p181 = scmp.eq.s32.totalorder %s24, 0
      %p182 = por %p180, %p181
      %s183 = ssub.s32 %s18, %s25
      %p184 = scmp.eq.s32.totalorder %s183, 0
      %s186 = sadd.s32 %s185, 1
      %s187 = scalar_select %p184, %s185, %s186
      %p190 = pneg %p184
      %p191 = scmp.eq.s32.totalorder %s18, 1
      %p192 = por %p190, %p191
      %p193 = scmp.ne.s32.totalorder %s185, %s188
      %p194 = scmp.eq.s32.totalorder %s18, 0
      %p195 = por %p193, %p194
      %p196 = scmp.ne.s32.totalorder %s185, %s188
      %p197 = scmp.eq.s32.totalorder %s23, 1
      %p198 = por %p196, %p197
      %p199 = scmp.ne.s32.totalorder %s188, %s189
      %p200 = scmp.eq.s32.totalorder %s23, 0
      %p201 = por %p199, %p200
      %p202 = scmp.ne.s32.totalorder %s188, %s189
      %p203 = scmp.eq.s32.totalorder %s24, 1
      %p204 = por %p202, %p203
      %p206 = scmp.ne.s32.totalorder %s189, %s205
      %p207 = scmp.eq.s32.totalorder %s24, 0
      %p208 = por %p206, %p207
      %p209 = scmp.le.s32.totalorder 1, %s18
      %p210 = scmp.lt.s32.totalorder %s18, 3
      %p211 = pnand %p209, %p210
      %p212 = pneg %p211
      // Predicated region
      $region9: #{tpu_custom_call.1} parent=5 // pred_check
        _
      $region10: #{tpu_custom_call.1} parent=5 // pred_check_branch
        %214 = sbr.rel (%p211) target = $region12
      $region11: #{tpu_custom_call.1} parent=5 // pred_region
        %s215 = ssub.s32 %s18, 1
        // Predicated region
        $region13: #{tpu_custom_call.1} parent=11 // pred_check
          %p216 = pneg %p91
        $region14: #{tpu_custom_call.1} parent=11 // pred_check_branch
          %218 = sbr.rel (%p216) target = $region16
        $region15: #{tpu_custom_call.1} parent=11 // pred_region
          %s220 = ssub.s32 3072, 3072
          %221 = vsyncadd [#allocation3], %s220
          %s222 = sshll.u32 [#allocation2], 4
          %s223 = int_to_ptr.vmem [resolvable:$true] %s222
          %228 = dma.hbm_to_vmem [thread:$0]  %s2, 3072, %s223, [#allocation3], 1024, 1024, 64
        $region16: #{tpu_custom_call.1} parent=11 // pred_fallthru
          _
        // Predicated region
        $region17: #{tpu_custom_call.1} parent=11 // pred_check
          %p229 = pneg %p112
        $region18: #{tpu_custom_call.1} parent=11 // pred_check_branch
          %231 = sbr.rel (%p229) target = $region20
        $region19: #{tpu_custom_call.1} parent=11 // pred_region
          %s233 = ssub.s32 8192, 8192
          %234 = vsyncadd [#allocation6], %s233
          %s235 = sshll.u32 [#allocation5], 4
          %s236 = int_to_ptr.vmem [resolvable:$true] %s235
          %241 = dma.hbm_to_vmem [thread:$0]  %s3, 8192, %s236, [#allocation6], 128, 128, 8
        $region20: #{tpu_custom_call.1} parent=11 // pred_fallthru
          _
        // Predicated region
        $region21: #{tpu_custom_call.1} parent=11 // pred_check
          %p242 = pneg %p133
        $region22: #{tpu_custom_call.1} parent=11 // pred_check_branch
          %244 = sbr.rel (%p242) target = $region24
        $region23: #{tpu_custom_call.1} parent=11 // pred_region
          _
        $region24: #{tpu_custom_call.1} parent=11 // pred_fallthru
          _
        // Predicated region
        $region25: #{tpu_custom_call.1} parent=11 // pred_check
          %p245 = pneg %p154
        $region26: #{tpu_custom_call.1} parent=11 // pred_check_branch
          %247 = sbr.rel (%p245) target = $region28
        $region27: #{tpu_custom_call.1} parent=11 // pred_region
          %s249 = ssub.s32 8192, 8192
          %250 = vsyncadd [#allocation6], %s249
          %s251 = sshll.u32 [#allocation7], 4
          %s252 = int_to_ptr.vmem [resolvable:$true] %s251
          %257 = dma.hbm_to_vmem [thread:$0]  %s5, 8192, %s252, [#allocation6], 128, 128, 8
        $region28: #{tpu_custom_call.1} parent=11 // pred_fallthru
          _
        // Predicated region
        $region29: #{tpu_custom_call.1} parent=11 // pred_check
          %p258 = pneg %p175
        $region30: #{tpu_custom_call.1} parent=11 // pred_check_branch
          %260 = sbr.rel (%p258) target = $region32
        $region31: #{tpu_custom_call.1} parent=11 // pred_region
          _
        $region32: #{tpu_custom_call.1} parent=11 // pred_fallthru
          _
      $region12: #{tpu_custom_call.1} parent=5 // pred_fallthru
        _
      %p261 = scmp.lt.s32.totalorder %s18, 2
      // Predicated region
      $region33: #{tpu_custom_call.1} parent=5 // pred_check
        %p262 = pneg %p261
      $region34: #{tpu_custom_call.1} parent=5 // pred_check_branch
        %264 = sbr.rel (%p262) target = $region36
      $region35: #{tpu_custom_call.1} parent=5 // pred_region
        // Predicated region
        $region37: #{tpu_custom_call.1} parent=35 // pred_check
          %p265 = pneg %p38
        $region38: #{tpu_custom_call.1} parent=35 // pred_check_branch
          %267 = sbr.rel (%p265) target = $region40
        $region39: #{tpu_custom_call.1} parent=35 // pred_region
          %s268 = smul.u32 4, %s18
          %p269 = scmp.lt.s32.totalorder %s268, 7
          %s270 = scalar_select %p269, %s268, 7
          %s271 = smul.addr %s270, 8
          %s272 = scalar_lea.vmem %s0, %s271
          %s273 = smul.u32 4, %s18
        $region40: #{tpu_custom_call.1} parent=35 // pred_fallthru
          _
        // Predicated region
        $region41: #{tpu_custom_call.1} parent=35 // pred_check
          %p274 = pneg %p64
        $region42: #{tpu_custom_call.1} parent=35 // pred_check_branch
          %276 = sbr.rel (%p274) target = $region44
        $region43: #{tpu_custom_call.1} parent=35 // pred_region
          %s277 = smul.u32 4, %s18
          %p278 = scmp.lt.s32.totalorder %s277, 7
          %s279 = scalar_select %p278, %s277, 7
          %s280 = smul.addr %s279, 8
          %s281 = scalar_lea.vmem %s1, %s280
          %s282 = smul.u32 4, %s18
        $region44: #{tpu_custom_call.1} parent=35 // pred_fallthru
          _
      $region36: #{tpu_custom_call.1} parent=5 // pred_fallthru
        _
      %p283 = scmp.le.s32.totalorder 1, %s18
      %p284 = scmp.lt.s32.totalorder %s18, 3
      %p285 = pnand %p283, %p284
      %p286 = pneg %p285
      // Predicated region
      $region45: #{tpu_custom_call.1} parent=5 // pred_check
        _
      $region46: #{tpu_custom_call.1} parent=5 // pred_check_branch
        %288 = sbr.rel (%p285) target = $region48
      $region47: #{tpu_custom_call.1} parent=5 // pred_region
        %s289 = ssub.s32 %s18, 1
        // Predicated region
        $region49: #{tpu_custom_call.1} parent=47 // pred_check
          %p290 = pneg %p91
        $region50: #{tpu_custom_call.1} parent=47 // pred_check_branch
          %292 = sbr.rel (%p290) target = $region52
        $region51: #{tpu_custom_call.1} parent=47 // pred_region
          %293 = dma.done [#allocation3], 3072
        $region52: #{tpu_custom_call.1} parent=47 // pred_fallthru
          _
        // Predicated region
        $region53: #{tpu_custom_call.1} parent=47 // pred_check
          %p294 = pneg %p112
        $region54: #{tpu_custom_call.1} parent=47 // pred_check_branch
          %296 = sbr.rel (%p294) target = $region56
        $region55: #{tpu_custom_call.1} parent=47 // pred_region
          %297 = dma.done [#allocation6], 8192
        $region56: #{tpu_custom_call.1} parent=47 // pred_fallthru
          _
        // Predicated region
        $region57: #{tpu_custom_call.1} parent=47 // pred_check
          %p298 = pneg %p154
        $region58: #{tpu_custom_call.1} parent=47 // pred_check_branch
          %300 = sbr.rel (%p298) target = $region60
        $region59: #{tpu_custom_call.1} parent=47 // pred_region
          %301 = dma.done [#allocation6], 8192
        $region60: #{tpu_custom_call.1} parent=47 // pred_fallthru
          _
        %s302 = smul.u32 4, %s23
        %p303 = scmp.lt.s32.totalorder %s302, 7
        %s304 = scalar_select %p303, %s302, 7
        %s305 = smul.addr %s304, 8
        %s306 = scalar_lea.vmem %s0, %s305
        %p307 = pneg %p44
        %p308 = pneg %p41
        %s309 = smul.u32 4, %s23
        %p310 = scmp.lt.s32.totalorder %s309, 7
        %s311 = scalar_select %p310, %s309, 7
        %s312 = smul.addr %s311, 8
        %s313 = scalar_lea.vmem %s1, %s312
        %p314 = pneg %p70
        %p315 = pneg %p67
        %p316 = pneg %p91
        %p317 = pneg %p88
        %p318 = pneg %p112
        %p319 = pneg %p109
        %p320 = pneg %p133
        %p321 = pneg %p130
        %p322 = pneg %p154
        %p323 = pneg %p151
        %p324 = pneg %p175
        %p325 = pneg %p172
        %p326 = pneg %p201
        %p327 = pneg %p198
        %s328 = sand.u32 %s188, 1
        %s329 = scalar_lea.sflag [#allocation4], %s328
        %s330 = sand.u32 %s188, 1
        %s331 = smul.addr %s330, 32
        %s332 = scalar_lea.vmem [#allocation8], %s331
        %s333 = smul.u32 4, %s23
        %p334 = scmp.lt.s32.totalorder %s333, 7
        %s335 = scalar_select %p334, %s333, 7
        %s336 = smul.addr %s335, 8
        %s337 = scalar_lea.vmem %s0, %s336
        %s338 = smul.u32 4, %s23
        %s339 = smul.u32 4, %s23
        %p340 = scmp.lt.s32.totalorder %s339, 7
        %s341 = scalar_select %p340, %s339, 7
        %s342 = smul.addr %s341, 8
        %s343 = scalar_lea.vmem %s1, %s342
        %s344 = smul.u32 4, %s23
        %s345 = smul.u32 4, %s23
        %v346 = vld [vmem:[%s337] sm:$0xff]
        %v347 = vld [vmem:[%s337 + $0x8] sm:$0xff]
        %v348 = vld [vmem:[%s337 + $0x10] sm:$0xff]
        %v349 = vld [vmem:[%s337 + $0x18] sm:$0xff]
        %v350 = vld [vmem:[%s343] sm:$0xff]
        %v351 = vld [vmem:[%s343 + $0x8] sm:$0xff]
        %v352 = vld [vmem:[%s343 + $0x10] sm:$0xff]
        %v353 = vld [vmem:[%s343 + $0x18] sm:$0xff]
        %v354 = vld [vmem:[#allocation2] sm:$0xff]
        %v355 = vld [vmem:[#allocation2 + $0x8] sm:$0xff]
        %v356 = vld [vmem:[#allocation2 + $0x10] sm:$0xff]
        %v357 = vld [vmem:[#allocation2 + $0x18] sm:$0xff]
        %v358 = vld [vmem:[#allocation2 + $0x20] sm:$0xff]
        %v359 = vld [vmem:[#allocation2 + $0x28] sm:$0xff]
        %v360 = vld [vmem:[#allocation2 + $0x30] sm:$0xff]
        %v361 = vld [vmem:[#allocation2 + $0x38] sm:$0xff]
        %v362 = vld [vmem:[#allocation2 + $0x40] sm:$0xff]
        %v363 = vld [vmem:[#allocation2 + $0x48] sm:$0xff]
        %v364 = vld [vmem:[#allocation2 + $0x50] sm:$0xff]
        %v365 = vld [vmem:[#allocation2 + $0x58] sm:$0xff]
        %v366 = vld [vmem:[#allocation2 + $0x60] sm:$0xff]
        %v367 = vld [vmem:[#allocation2 + $0x68] sm:$0xff]
        %v368 = vld [vmem:[#allocation2 + $0x70] sm:$0xff]
        %v369 = vld [vmem:[#allocation2 + $0x78] sm:$0xff]
        %v370 = vld [vmem:[#allocation2 + $0x80] sm:$0xff]
        %v371 = vld [vmem:[#allocation2 + $0x88] sm:$0xff]
        %v372 = vld [vmem:[#allocation2 + $0x90] sm:$0xff]
        %v373 = vld [vmem:[#allocation2 + $0x98] sm:$0xff]
        %v374 = vld [vmem:[#allocation2 + $0xa0] sm:$0xff]
        %v375 = vld [vmem:[#allocation2 + $0xa8] sm:$0xff]
        %v376 = vld [vmem:[#allocation2 + $0xb0] sm:$0xff]
        %v377 = vld [vmem:[#allocation2 + $0xb8] sm:$0xff]
        %vm378 = vcmask 195584
        %v380 = vsel %vm378, %v346, 0
        %v383 = vsel %vm378, %v347, 0
        %v386 = vsel %vm378, %v348, 0
        %v389 = vsel %vm378, %v349, 0
        %391 = vmatprep.subr.mxu0 %v355
        %392 = vmatpush1.msra.mxu0 %v354
        %393 = vmatprep.subr.mxu0 %v363
        %394 = vmatpush1.msra.mxu0 %v362
        %395 = vmatprep.subr.mxu0 %v371
        %396 = vmatpush1.msra.mxu0 %v370
        %397 = vmatprep.subr.mxu0 0.0
        %398 = vmatpush1.msra.mxu0 0.0
        %399 = vmatprep.subr.mxu0 0.0
        %400 = vmatpush1.msra.mxu0 0.0
        %401 = vmatprep.subr.mxu0 0.0
        %402 = vmatpush1.msra.mxu0 0.0
        %403 = vmatprep.subr.mxu0 0.0
        %404 = vmatpush1.msra.mxu0 0.0
        %405 = vmatprep.subr.mxu0 0.0
        %406 = vmatpush1.msra.mxu0 0.0
        %407 = vmatprep.subr.mxu0 0.0
        %408 = vmatpush1.msra.mxu0 0.0
        %409 = vmatprep.subr.mxu0 0.0
        %410 = vmatpush1.msra.mxu0 0.0
        %411 = vmatprep.subr.mxu0 0.0
        %412 = vmatpush1.msra.mxu0 0.0
        %413 = vmatprep.subr.mxu0 0.0
        %414 = vmatpush1.msra.mxu0 0.0
        %415 = vmatprep.subr.mxu0 0.0
        %416 = vmatpush1.msra.mxu0 0.0
        %417 = vmatprep.subr.mxu0 0.0
        %418 = vmatpush1.msra.mxu0 0.0
        %419 = vmatprep.subr.mxu0 0.0
        %420 = vmatpush1.msra.mxu0 0.0
        %421 = vmatprep.subr.mxu0 0.0
        %422 = vmatpush1.msra.mxu0 0.0
        %423 = vmatprep.subr.mxu0 0.0
        %424 = vmatpush1.msra.mxu0 0.0
        %425 = vmatprep.subr.mxu0 0.0
        %426 = vmatpush1.msra.mxu0 0.0
        %427 = vmatprep.subr.mxu0 0.0
        %428 = vmatpush1.msra.mxu0 0.0
        %429 = vmatprep.subr.mxu0 0.0
        %430 = vmatpush1.msra.mxu0 0.0
        %431 = vmatprep.subr.mxu0 0.0
        %432 = vmatpush1.msra.mxu0 0.0
        %433 = vmatprep.subr.mxu0 0.0
        %434 = vmatpush1.msra.mxu0 0.0
        %435 = vmatprep.subr.mxu0 0.0
        %436 = vmatpush1.msra.mxu0 0.0
        %437 = vmatprep.subr.mxu0 0.0
        %438 = vmatpush1.msra.mxu0 0.0
        %439 = vmatprep.subr.mxu0 0.0
        %440 = vmatpush1.msra.mxu0 0.0
        %441 = vmatprep.subr.mxu0 0.0
        %442 = vmatpush1.msra.mxu0 0.0
        %443 = vmatprep.subr.mxu0 0.0
        %444 = vmatpush1.msra.mxu0 0.0
        %445 = vmatprep.subr.mxu0 0.0
        %446 = vmatpush1.msra.mxu0 0.0
        %447 = vmatprep.subr.mxu0 0.0
        %448 = vmatpush1.msra.mxu0 0.0
        %449 = vmatprep.subr.mxu0 0.0
        %450 = vmatpush1.msra.mxu0 0.0
        %451 = vmatprep.subr.mxu0 0.0
        %452 = vmatpush1.msra.mxu0 0.0
        %453 = vmatprep.subr.mxu0 0.0
        %454 = vmatpush1.msra.mxu0 0.0
        %455 = vmatprep.mubr.f32.mxu0 0.0
        %456 = vmatmul.mubr.f32.gmra.mrb[0].mxu0 %v380
        %v457 = vpop.f32.mrb[0].mxu0
        %v458 = vadd.f32 0.0, %v457
        %v459 = vpop.f32.mrb[0].mxu0
        %v460 = vadd.f32 0.0, %v459
        %461 = vmatprep.mubr.f32.mxu0 0.0
        %462 = vmatmul.mubr.f32.gmra.mrb[0].mxu0 %v383
        %v463 = vpop.f32.mrb[0].mxu0
        %v464 = vadd.f32 0.0, %v463
        %v465 = vpop.f32.mrb[0].mxu0
        %v466 = vadd.f32 0.0, %v465
        %467 = vmatprep.mubr.f32.mxu0 0.0
        %468 = vmatmul.mubr.f32.gmra.mrb[0].mxu0 %v386
        %v469 = vpop.f32.mrb[0].mxu0
        %v470 = vadd.f32 0.0, %v469
        %v471 = vpop.f32.mrb[0].mxu0
        %v472 = vadd.f32 0.0, %v471
        %473 = vmatprep.mubr.f32.mxu0 0.0
        %474 = vmatmul.mubr.f32.gmra.mrb[0].mxu0 %v389
        %v475 = vpop.f32.mrb[0].mxu0
        %v476 = vadd.f32 0.0, %v475
        %v477 = vpop.f32.mrb[0].mxu0
        %v478 = vadd.f32 0.0, %v477
        %479 = vdwg.mxu0
        %480 = vmatprep.subr.mxu0 %v357
        %481 = vmatpush1.msra.mxu0 %v356
        %482 = vmatprep.subr.mxu0 %v365
        %483 = vmatpush1.msra.mxu0 %v364
        %484 = vmatprep.subr.mxu0 %v373
        %485 = vmatpush1.msra.mxu0 %v372
        %486 = vmatprep.subr.mxu0 0.0
        %487 = vmatpush1.msra.mxu0 0.0
        %488 = vmatprep.subr.mxu0 0.0
        %489 = vmatpush1.msra.mxu0 0.0
        %490 = vmatprep.subr.mxu0 0.0
        %491 = vmatpush1.msra.mxu0 0.0
        %492 = vmatprep.subr.mxu0 0.0
        %493 = vmatpush1.msra.mxu0 0.0
        %494 = vmatprep.subr.mxu0 0.0
        %495 = vmatpush1.msra.mxu0 0.0
        %496 = vmatprep.subr.mxu0 0.0
        %497 = vmatpush1.msra.mxu0 0.0
        %498 = vmatprep.subr.mxu0 0.0
        %499 = vmatpush1.msra.mxu0 0.0
        %500 = vmatprep.subr.mxu0 0.0
        %501 = vmatpush1.msra.mxu0 0.0
        %502 = vmatprep.subr.mxu0 0.0
        %503 = vmatpush1.msra.mxu0 0.0
        %504 = vmatprep.subr.mxu0 0.0
        %505 = vmatpush1.msra.mxu0 0.0
        %506 = vmatprep.subr.mxu0 0.0
        %507 = vmatpush1.msra.mxu0 0.0
        %508 = vmatprep.subr.mxu0 0.0
        %509 = vmatpush1.msra.mxu0 0.0
        %510 = vmatprep.subr.mxu0 0.0
        %511 = vmatpush1.msra.mxu0 0.0
        %512 = vmatprep.subr.mxu0 0.0
        %513 = vmatpush1.msra.mxu0 0.0
        %514 = vmatprep.subr.mxu0 0.0
        %515 = vmatpush1.msra.mxu0 0.0
        %516 = vmatprep.subr.mxu0 0.0
        %517 = vmatpush1.msra.mxu0 0.0
        %518 = vmatprep.subr.mxu0 0.0
        %519 = vmatpush1.msra.mxu0 0.0
        %520 = vmatprep.subr.mxu0 0.0
        %521 = vmatpush1.msra.mxu0 0.0
        %522 = vmatprep.subr.mxu0 0.0
        %523 = vmatpush1.msra.mxu0 0.0
        %524 = vmatprep.subr.mxu0 0.0
        %525 = vmatpush1.msra.mxu0 0.0
        %526 = vmatprep.subr.mxu0 0.0
        %527 = vmatpush1.msra.mxu0 0.0
        %528 = vmatprep.subr.mxu0 0.0
        %529 = vmatpush1.msra.mxu0 0.0
        %530 = vmatprep.subr.mxu0 0.0
        %531 = vmatpush1.msra.mxu0 0.0
        %532 = vmatprep.subr.mxu0 0.0
        %533 = vmatpush1.msra.mxu0 0.0
        %534 = vmatprep.subr.mxu0 0.0
        %535 = vmatpush1.msra.mxu0 0.0
        %536 = vmatprep.subr.mxu0 0.0
        %537 = vmatpush1.msra.mxu0 0.0
        %538 = vmatprep.subr.mxu0 0.0
        %539 = vmatpush1.msra.mxu0 0.0
        %540 = vmatprep.subr.mxu0 0.0
        %541 = vmatpush1.msra.mxu0 0.0
        %542 = vmatprep.subr.mxu0 0.0
        %543 = vmatpush1.msra.mxu0 0.0
        %544 = vmatprep.mubr.f32.mxu0 0.0
        %545 = vmatmul.mubr.f32.gmra.mrb[0].mxu0 %v380
        %v546 = vpop.f32.mrb[0].mxu0
        %v547 = vadd.f32 0.0, %v546
        %v548 = vpop.f32.mrb[0].mxu0
        %v549 = vadd.f32 0.0, %v548
        %550 = vmatprep.mubr.f32.mxu0 0.0
        %551 = vmatmul.mubr.f32.gmra.mrb[0].mxu0 %v383
        %v552 = vpop.f32.mrb[0].mxu0
        %v553 = vadd.f32 0.0, %v552
        %v554 = vpop.f32.mrb[0].mxu0
        %v555 = vadd.f32 0.0, %v554
        %556 = vmatprep.mubr.f32.mxu0 0.0
        %557 = vmatmul.mubr.f32.gmra.mrb[0].mxu0 %v386
        %v558 = vpop.f32.mrb[0].mxu0
        %v559 = vadd.f32 0.0, %v558
        %v560 = vpop.f32.mrb[0].mxu0
        %v561 = vadd.f32 0.0, %v560
        %562 = vmatprep.mubr.f32.mxu0 0.0
        %563 = vmatmul.mubr.f32.gmra.mrb[0].mxu0 %v389
        %v564 = vpop.f32.mrb[0].mxu0
        %v565 = vadd.f32 0.0, %v564
        %v566 = vpop.f32.mrb[0].mxu0
        %v567 = vadd.f32 0.0, %v566
        %568 = vdwg.mxu0
        %569 = vmatprep.subr.mxu0 %v359
        %570 = vmatpush1.msra.mxu0 %v358
        %571 = vmatprep.subr.mxu0 %v367
        %572 = vmatpush1.msra.mxu0 %v366
        %573 = vmatprep.subr.mxu0 %v375
        %574 = vmatpush1.msra.mxu0 %v374
        %575 = vmatprep.subr.mxu0 0.0
        %576 = vmatpush1.msra.mxu0 0.0
        %577 = vmatprep.subr.mxu0 0.0
        %578 = vmatpush1.msra.mxu0 0.0
        %579 = vmatprep.subr.mxu0 0.0
        %580 = vmatpush1.msra.mxu0 0.0
        %581 = vmatprep.subr.mxu0 0.0
        %582 = vmatpush1.msra.mxu0 0.0
        %583 = vmatprep.subr.mxu0 0.0
        %584 = vmatpush1.msra.mxu0 0.0
        %585 = vmatprep.subr.mxu0 0.0
        %586 = vmatpush1.msra.mxu0 0.0
        %587 = vmatprep.subr.mxu0 0.0
        %588 = vmatpush1.msra.mxu0 0.0
        %589 = vmatprep.subr.mxu0 0.0
        %590 = vmatpush1.msra.mxu0 0.0
        %591 = vmatprep.subr.mxu0 0.0
        %592 = vmatpush1.msra.mxu0 0.0
        %593 = vmatprep.subr.mxu0 0.0
        %594 = vmatpush1.msra.mxu0 0.0
        %595 = vmatprep.subr.mxu0 0.0
        %596 = vmatpush1.msra.mxu0 0.0
        %597 = vmatprep.subr.mxu0 0.0
        %598 = vmatpush1.msra.mxu0 0.0
        %599 = vmatprep.subr.mxu0 0.0
        %600 = vmatpush1.msra.mxu0 0.0
        %601 = vmatprep.subr.mxu0 0.0
        %602 = vmatpush1.msra.mxu0 0.0
        %603 = vmatprep.subr.mxu0 0.0
        %604 = vmatpush1.msra.mxu0 0.0
        %605 = vmatprep.subr.mxu0 0.0
        %606 = vmatpush1.msra.mxu0 0.0
        %607 = vmatprep.subr.mxu0 0.0
        %608 = vmatpush1.msra.mxu0 0.0
        %609 = vmatprep.subr.mxu0 0.0
        %610 = vmatpush1.msra.mxu0 0.0
        %611 = vmatprep.subr.mxu0 0.0
        %612 = vmatpush1.msra.mxu0 0.0
        %613 = vmatprep.subr.mxu0 0.0
        %614 = vmatpush1.msra.mxu0 0.0
        %615 = vmatprep.subr.mxu0 0.0
        %616 = vmatpush1.msra.mxu0 0.0
        %617 = vmatprep.subr.mxu0 0.0
        %618 = vmatpush1.msra.mxu0 0.0
        %619 = vmatprep.subr.mxu0 0.0
        %620 = vmatpush1.msra.mxu0 0.0
        %621 = vmatprep.subr.mxu0 0.0
        %622 = vmatpush1.msra.mxu0 0.0
        %623 = vmatprep.subr.mxu0 0.0
        %624 = vmatpush1.msra.mxu0 0.0
        %625 = vmatprep.subr.mxu0 0.0
        %626 = vmatpush1.msra.mxu0 0.0
        %627 = vmatprep.subr.mxu0 0.0
        %628 = vmatpush1.msra.mxu0 0.0
        %629 = vmatprep.subr.mxu0 0.0
        %630 = vmatpush1.msra.mxu0 0.0
        %631 = vmatprep.subr.mxu0 0.0
        %632 = vmatpush1.msra.mxu0 0.0
        %633 = vmatprep.mubr.f32.mxu0 0.0
        %634 = vmatmul.mubr.f32.gmra.mrb[0].mxu0 %v380
        %v635 = vpop.f32.mrb[0].mxu0
        %v636 = vadd.f32 0.0, %v635
        %v637 = vpop.f32.mrb[0].mxu0
        %v638 = vadd.f32 0.0, %v637
        %639 = vmatprep.mubr.f32.mxu0 0.0
        %640 = vmatmul.mubr.f32.gmra.mrb[0].mxu0 %v383
        %v641 = vpop.f32.mrb[0].mxu0
        %v642 = vadd.f32 0.0, %v641
        %v643 = vpop.f32.mrb[0].mxu0
        %v644 = vadd.f32 0.0, %v643
        %645 = vmatprep.mubr.f32.mxu0 0.0
        %646 = vmatmul.mubr.f32.gmra.mrb[0].mxu0 %v386
        %v647 = vpop.f32.mrb[0].mxu0
        %v648 = vadd.f32 0.0, %v647
        %v649 = vpop.f32.mrb[0].mxu0
        %v650 = vadd.f32 0.0, %v649
        %651 = vmatprep.mubr.f32.mxu0 0.0
        %652 = vmatmul.mubr.f32.gmra.mrb[0].mxu0 %v389
        %v653 = vpop.f32.mrb[0].mxu0
        %v654 = vadd.f32 0.0, %v653
        %v655 = vpop.f32.mrb[0].mxu0
        %v656 = vadd.f32 0.0, %v655
        %657 = vdwg.mxu0
        %658 = vmatprep.subr.mxu0 %v361
        %659 = vmatpush1.msra.mxu0 %v360
        %660 = vmatprep.subr.mxu0 %v369
        %661 = vmatpush1.msra.mxu0 %v368
        %662 = vmatprep.subr.mxu0 %v377
        %663 = vmatpush1.msra.mxu0 %v376
        %664 = vmatprep.subr.mxu0 0.0
        %665 = vmatpush1.msra.mxu0 0.0
        %666 = vmatprep.subr.mxu0 0.0
        %667 = vmatpush1.msra.mxu0 0.0
        %668 = vmatprep.subr.mxu0 0.0
        %669 = vmatpush1.msra.mxu0 0.0
        %670 = vmatprep.subr.mxu0 0.0
        %671 = vmatpush1.msra.mxu0 0.0
        %672 = vmatprep.subr.mxu0 0.0
        %673 = vmatpush1.msra.mxu0 0.0
        %674 = vmatprep.subr.mxu0 0.0
        %675 = vmatpush1.msra.mxu0 0.0
        %676 = vmatprep.subr.mxu0 0.0
        %677 = vmatpush1.msra.mxu0 0.0
        %678 = vmatprep.subr.mxu0 0.0
        %679 = vmatpush1.msra.mxu0 0.0
        %680 = vmatprep.subr.mxu0 0.0
        %681 = vmatpush1.msra.mxu0 0.0
        %682 = vmatprep.subr.mxu0 0.0
        %683 = vmatpush1.msra.mxu0 0.0
        %684 = vmatprep.subr.mxu0 0.0
        %685 = vmatpush1.msra.mxu0 0.0
        %686 = vmatprep.subr.mxu0 0.0
        %687 = vmatpush1.msra.mxu0 0.0
        %688 = vmatprep.subr.mxu0 0.0
        %689 = vmatpush1.msra.mxu0 0.0
        %690 = vmatprep.subr.mxu0 0.0
        %691 = vmatpush1.msra.mxu0 0.0
        %692 = vmatprep.subr.mxu0 0.0
        %693 = vmatpush1.msra.mxu0 0.0
        %694 = vmatprep.subr.mxu0 0.0
        %695 = vmatpush1.msra.mxu0 0.0
        %696 = vmatprep.subr.mxu0 0.0
        %697 = vmatpush1.msra.mxu0 0.0
        %698 = vmatprep.subr.mxu0 0.0
        %699 = vmatpush1.msra.mxu0 0.0
        %700 = vmatprep.subr.mxu0 0.0
        %701 = vmatpush1.msra.mxu0 0.0
        %702 = vmatprep.subr.mxu0 0.0
        %703 = vmatpush1.msra.mxu0 0.0
        %704 = vmatprep.subr.mxu0 0.0
        %705 = vmatpush1.msra.mxu0 0.0
        %706 = vmatprep.subr.mxu0 0.0
        %707 = vmatpush1.msra.mxu0 0.0
        %708 = vmatprep.subr.mxu0 0.0
        %709 = vmatpush1.msra.mxu0 0.0
        %710 = vmatprep.subr.mxu0 0.0
        %711 = vmatpush1.msra.mxu0 0.0
        %712 = vmatprep.subr.mxu0 0.0
        %713 = vmatpush1.msra.mxu0 0.0
        %714 = vmatprep.subr.mxu0 0.0
        %715 = vmatpush1.msra.mxu0 0.0
        %716 = vmatprep.subr.mxu0 0.0
        %717 = vmatpush1.msra.mxu0 0.0
        %718 = vmatprep.subr.mxu0 0.0
        %719 = vmatpush1.msra.mxu0 0.0
        %720 = vmatprep.subr.mxu0 0.0
        %721 = vmatpush1.msra.mxu0 0.0
        %722 = vmatprep.mubr.f32.mxu0 0.0
        %723 = vmatmul.mubr.f32.gmra.mrb[0].mxu0 %v380
        %v724 = vpop.f32.mrb[0].mxu0
        %v725 = vadd.f32 0.0, %v724
        %v726 = vpop.f32.mrb[0].mxu0
        %v727 = vadd.f32 0.0, %v726
        %728 = vmatprep.mubr.f32.mxu0 0.0
        %729 = vmatmul.mubr.f32.gmra.mrb[0].mxu0 %v383
        %v730 = vpop.f32.mrb[0].mxu0
        %v731 = vadd.f32 0.0, %v730
        %v732 = vpop.f32.mrb[0].mxu0
        %v733 = vadd.f32 0.0, %v732
        %734 = vmatprep.mubr.f32.mxu0 0.0
        %735 = vmatmul.mubr.f32.gmra.mrb[0].mxu0 %v386
        %v736 = vpop.f32.mrb[0].mxu0
        %v737 = vadd.f32 0.0, %v736
        %v738 = vpop.f32.mrb[0].mxu0
        %v739 = vadd.f32 0.0, %v738
        %740 = vmatprep.mubr.f32.mxu0 0.0
        %741 = vmatmul.mubr.f32.gmra.mrb[0].mxu0 %v389
        %v742 = vpop.f32.mrb[0].mxu0
        %v743 = vadd.f32 0.0, %v742
        %v744 = vpop.f32.mrb[0].mxu0
        %v745 = vadd.f32 0.0, %v744
        %746 = vdwg.mxu0
        %v747 = vld [vmem:[%s6] sm:$0xf]
        %v749 = vlaneseq
        %v750 = vshrl.u32 %v749, 7
        %v751 = vsub.s32 0, %v750
        %v752 = vrot.slane %v747, %v751
        %v753 = vlaneseq
        %v754 = vshrl.u32 %v753, 7
        %v755 = vsub.s32 1, %v754
        %v756 = vrot.slane %v747, %v755
        %v757 = vlaneseq
        %v758 = vshrl.u32 %v757, 7
        %v759 = vsub.s32 2, %v758
        %v760 = vrot.slane %v747, %v759
        %v761 = vlaneseq
        %v762 = vshrl.u32 %v761, 7
        %v763 = vsub.s32 3, %v762
        %v764 = vrot.slane %v747, %v763
        %v769 = vadd.f32 %v458, %v752
        %v770 = vadd.f32 %v460, %v756
        %v771 = vadd.f32 %v547, %v760
        %v772 = vadd.f32 %v549, %v764
        %v773 = vadd.f32 %v464, %v752
        %v774 = vadd.f32 %v466, %v756
        %v775 = vadd.f32 %v553, %v760
        %v776 = vadd.f32 %v555, %v764
        %v777 = vadd.f32 %v470, %v752
        %v778 = vadd.f32 %v472, %v756
        %v779 = vadd.f32 %v559, %v760
        %v780 = vadd.f32 %v561, %v764
        %v781 = vadd.f32 %v476, %v752
        %v782 = vadd.f32 %v478, %v756
        %v783 = vadd.f32 %v565, %v760
        %v784 = vadd.f32 %v567, %v764
        %vm785 = vcmp.gt.f32.partialorder %v769, 0.0
        %vm786 = vcmp.gt.f32.partialorder %v770, 0.0
        %vm787 = vcmp.gt.f32.partialorder %v771, 0.0
        %vm788 = vcmp.gt.f32.partialorder %v772, 0.0
        %vm789 = vcmp.gt.f32.partialorder %v773, 0.0
        %vm790 = vcmp.gt.f32.partialorder %v774, 0.0
        %vm791 = vcmp.gt.f32.partialorder %v775, 0.0
        %vm792 = vcmp.gt.f32.partialorder %v776, 0.0
        %vm793 = vcmp.gt.f32.partialorder %v777, 0.0
        %vm794 = vcmp.gt.f32.partialorder %v778, 0.0
        %vm795 = vcmp.gt.f32.partialorder %v779, 0.0
        %vm796 = vcmp.gt.f32.partialorder %v780, 0.0
        %vm797 = vcmp.gt.f32.partialorder %v781, 0.0
        %vm798 = vcmp.gt.f32.partialorder %v782, 0.0
        %vm799 = vcmp.gt.f32.partialorder %v783, 0.0
        %vm800 = vcmp.gt.f32.partialorder %v784, 0.0
        %v801 = vmin.f32 %v769, 0.0
        %v802 = vmin.f32 %v770, 0.0
        %v803 = vmin.f32 %v771, 0.0
        %v804 = vmin.f32 %v772, 0.0
        %v805 = vmin.f32 %v773, 0.0
        %v806 = vmin.f32 %v774, 0.0
        %v807 = vmin.f32 %v775, 0.0
        %v808 = vmin.f32 %v776, 0.0
        %v809 = vmin.f32 %v777, 0.0
        %v810 = vmin.f32 %v778, 0.0
        %v811 = vmin.f32 %v779, 0.0
        %v812 = vmin.f32 %v780, 0.0
        %v813 = vmin.f32 %v781, 0.0
        %v814 = vmin.f32 %v782, 0.0
        %v815 = vmin.f32 %v783, 0.0
        %v816 = vmin.f32 %v784, 0.0
        %v817 = vmul.f32 %v801, 1.442695
        %v818 = vpow.pop %v817
        %v819 = vmul.f32 %v802, 1.442695
        %v820 = vpow.pop %v819
        %v821 = vmul.f32 %v803, 1.442695
        %v822 = vpow.pop %v821
        %v823 = vmul.f32 %v804, 1.442695
        %v824 = vpow.pop %v823
        %v825 = vmul.f32 %v805, 1.442695
        %v826 = vpow.pop %v825
        %v827 = vmul.f32 %v806, 1.442695
        %v828 = vpow.pop %v827
        %v829 = vmul.f32 %v807, 1.442695
        %v830 = vpow.pop %v829
        %v831 = vmul.f32 %v808, 1.442695
        %v832 = vpow.pop %v831
        %v833 = vmul.f32 %v809, 1.442695
        %v834 = vpow.pop %v833
        %v835 = vmul.f32 %v810, 1.442695
        %v836 = vpow.pop %v835
        %v837 = vmul.f32 %v811, 1.442695
        %v838 = vpow.pop %v837
        %v839 = vmul.f32 %v812, 1.442695
        %v840 = vpow.pop %v839
        %v841 = vmul.f32 %v813, 1.442695
        %v842 = vpow.pop %v841
        %v843 = vmul.f32 %v814, 1.442695
        %v844 = vpow.pop %v843
        %v845 = vmul.f32 %v815, 1.442695
        %v846 = vpow.pop %v845
        %v847 = vmul.f32 %v816, 1.442695
        %v848 = vpow.pop %v847
        %v849 = vsub.f32 %v818, 1.0
        %v850 = vsub.f32 %v820, 1.0
        %v851 = vsub.f32 %v822, 1.0
        %v852 = vsub.f32 %v824, 1.0
        %v853 = vsub.f32 %v826, 1.0
        %v854 = vsub.f32 %v828, 1.0
        %v855 = vsub.f32 %v830, 1.0
        %v856 = vsub.f32 %v832, 1.0
        %v857 = vsub.f32 %v834, 1.0
        %v858 = vsub.f32 %v836, 1.0
        %v859 = vsub.f32 %v838, 1.0
        %v860 = vsub.f32 %v840, 1.0
        %v861 = vsub.f32 %v842, 1.0
        %v862 = vsub.f32 %v844, 1.0
        %v863 = vsub.f32 %v846, 1.0
        %v864 = vsub.f32 %v848, 1.0
        %v865 = vsel %vm785, %v769, %v849
        %v866 = vsel %vm786, %v770, %v850
        %v867 = vsel %vm787, %v771, %v851
        %v868 = vsel %vm788, %v772, %v852
        %v869 = vsel %vm789, %v773, %v853
        %v870 = vsel %vm790, %v774, %v854
        %v871 = vsel %vm791, %v775, %v855
        %v872 = vsel %vm792, %v776, %v856
        %v873 = vsel %vm793, %v777, %v857
        %v874 = vsel %vm794, %v778, %v858
        %v875 = vsel %vm795, %v779, %v859
        %v876 = vsel %vm796, %v780, %v860
        %v877 = vsel %vm797, %v781, %v861
        %v878 = vsel %vm798, %v782, %v862
        %v879 = vsel %vm799, %v783, %v863
        %v880 = vsel %vm800, %v784, %v864
        %v881 = vld [vmem:[#allocation5] sm:$0xff]
        %v882 = vld [vmem:[#allocation5 + $0x8] sm:$0xff]
        %v883 = vld [vmem:[#allocation5 + $0x10] sm:$0xff]
        %v884 = vld [vmem:[#allocation5 + $0x18] sm:$0xff]
        %v885 = vld [vmem:[#allocation5 + $0x20] sm:$0xff]
        %v886 = vld [vmem:[#allocation5 + $0x28] sm:$0xff]
        %v887 = vld [vmem:[#allocation5 + $0x30] sm:$0xff]
        %v888 = vld [vmem:[#allocation5 + $0x38] sm:$0xff]
        %v889 = vld [vmem:[#allocation5 + $0x40] sm:$0xff]
        %v890 = vld [vmem:[#allocation5 + $0x48] sm:$0xff]
        %v891 = vld [vmem:[#allocation5 + $0x50] sm:$0xff]
        %v892 = vld [vmem:[#allocation5 + $0x58] sm:$0xff]
        %v893 = vld [vmem:[#allocation5 + $0x60] sm:$0xff]
        %v894 = vld [vmem:[#allocation5 + $0x68] sm:$0xff]
        %v895 = vld [vmem:[#allocation5 + $0x70] sm:$0xff]
        %v896 = vld [vmem:[#allocation5 + $0x78] sm:$0xff]
        %v897 = vld [vmem:[#allocation5 + $0x80] sm:$0xff]
        %v898 = vld [vmem:[#allocation5 + $0x88] sm:$0xff]
        %v899 = vld [vmem:[#allocation5 + $0x90] sm:$0xff]
        %v900 = vld [vmem:[#allocation5 + $0x98] sm:$0xff]
        %v901 = vld [vmem:[#allocation5 + $0xa0] sm:$0xff]
        %v902 = vld [vmem:[#allocation5 + $0xa8] sm:$0xff]
        %v903 = vld [vmem:[#allocation5 + $0xb0] sm:$0xff]
        %v904 = vld [vmem:[#allocation5 + $0xb8] sm:$0xff]
        %v905 = vld [vmem:[#allocation5 + $0xc0] sm:$0xff]
        %v906 = vld [vmem:[#allocation5 + $0xc8] sm:$0xff]
        %v907 = vld [vmem:[#allocation5 + $0xd0] sm:$0xff]
        %v908 = vld [vmem:[#allocation5 + $0xd8] sm:$0xff]
        %v909 = vld [vmem:[#allocation5 + $0xe0] sm:$0xff]
        %v910 = vld [vmem:[#allocation5 + $0xe8] sm:$0xff]
        %v911 = vld [vmem:[#allocation5 + $0xf0] sm:$0xff]
        %v912 = vld [vmem:[#allocation5 + $0xf8] sm:$0xff]
        %v913 = vld [vmem:[#allocation5 + $0x100] sm:$0xff]
        %v914 = vld [vmem:[#allocation5 + $0x108] sm:$0xff]
        %v915 = vld [vmem:[#allocation5 + $0x110] sm:$0xff]
        %v916 = vld [vmem:[#allocation5 + $0x118] sm:$0xff]
        %v917 = vld [vmem:[#allocation5 + $0x120] sm:$0xff]
        %v918 = vld [vmem:[#allocation5 + $0x128] sm:$0xff]
        %v919 = vld [vmem:[#allocation5 + $0x130] sm:$0xff]
        %v920 = vld [vmem:[#allocation5 + $0x138] sm:$0xff]
        %v921 = vld [vmem:[#allocation5 + $0x140] sm:$0xff]
        %v922 = vld [vmem:[#allocation5 + $0x148] sm:$0xff]
        %v923 = vld [vmem:[#allocation5 + $0x150] sm:$0xff]
        %v924 = vld [vmem:[#allocation5 + $0x158] sm:$0xff]
        %v925 = vld [vmem:[#allocation5 + $0x160] sm:$0xff]
        %v926 = vld [vmem:[#allocation5 + $0x168] sm:$0xff]
        %v927 = vld [vmem:[#allocation5 + $0x170] sm:$0xff]
        %v928 = vld [vmem:[#allocation5 + $0x178] sm:$0xff]
        %v929 = vld [vmem:[#allocation5 + $0x180] sm:$0xff]
        %v930 = vld [vmem:[#allocation5 + $0x188] sm:$0xff]
        %v931 = vld [vmem:[#allocation5 + $0x190] sm:$0xff]
        %v932 = vld [vmem:[#allocation5 + $0x198] sm:$0xff]
        %v933 = vld [vmem:[#allocation5 + $0x1a0] sm:$0xff]
        %v934 = vld [vmem:[#allocation5 + $0x1a8] sm:$0xff]
        %v935 = vld [vmem:[#allocation5 + $0x1b0] sm:$0xff]
        %v936 = vld [vmem:[#allocation5 + $0x1b8] sm:$0xff]
        %v937 = vld [vmem:[#allocation5 + $0x1c0] sm:$0xff]
        %v938 = vld [vmem:[#allocation5 + $0x1c8] sm:$0xff]
        %v939 = vld [vmem:[#allocation5 + $0x1d0] sm:$0xff]
        %v940 = vld [vmem:[#allocation5 + $0x1d8] sm:$0xff]
        %v941 = vld [vmem:[#allocation5 + $0x1e0] sm:$0xff]
        %v942 = vld [vmem:[#allocation5 + $0x1e8] sm:$0xff]
        %v943 = vld [vmem:[#allocation5 + $0x1f0] sm:$0xff]
        %v944 = vld [vmem:[#allocation5 + $0x1f8] sm:$0xff]
        %v945 = vld [vmem:[%s6 + $0x8] sm:$0x1]
        %v947 = vlaneseq
        %v948 = vshrl.u32 %v947, 7
        %v949 = vsub.s32 0, %v948
        %v950 = vrot.slane %v945, %v949
        %952 = vmatprep.subr.mxu0 0.0
        %953 = vmatpush1.msra.mxu0 %v881
        %954 = vmatprep.subr.mxu0 0.0
        %955 = vmatpush1.msra.mxu0 %v882
        %956 = vmatprep.subr.mxu0 0.0
        %957 = vmatpush1.msra.mxu0 %v883
        %958 = vmatprep.subr.mxu0 0.0
        %959 = vmatpush1.msra.mxu0 %v884
        %960 = vmatprep.subr.mxu0 0.0
        %961 = vmatpush1.msra.mxu0 %v885
        %962 = vmatprep.subr.mxu0 0.0
        %963 = vmatpush1.msra.mxu0 %v886
        %964 = vmatprep.subr.mxu0 0.0
        %965 = vmatpush1.msra.mxu0 %v887
        %966 = vmatprep.subr.mxu0 0.0
        %967 = vmatpush1.msra.mxu0 %v888
        %968 = vmatprep.subr.mxu0 0.0
        %969 = vmatpush1.msra.mxu0 %v889
        %970 = vmatprep.subr.mxu0 0.0
        %971 = vmatpush1.msra.mxu0 %v890
        %972 = vmatprep.subr.mxu0 0.0
        %973 = vmatpush1.msra.mxu0 %v891
        %974 = vmatprep.subr.mxu0 0.0
        %975 = vmatpush1.msra.mxu0 %v892
        %976 = vmatprep.subr.mxu0 0.0
        %977 = vmatpush1.msra.mxu0 %v893
        %978 = vmatprep.subr.mxu0 0.0
        %979 = vmatpush1.msra.mxu0 %v894
        %980 = vmatprep.subr.mxu0 0.0
        %981 = vmatpush1.msra.mxu0 %v895
        %982 = vmatprep.subr.mxu0 0.0
        %983 = vmatpush1.msra.mxu0 %v896
        %984 = vmatprep.subr.mxu0 0.0
        %985 = vmatpush1.msra.mxu0 %v897
        %986 = vmatprep.subr.mxu0 0.0
        %987 = vmatpush1.msra.mxu0 %v898
        %988 = vmatprep.subr.mxu0 0.0
        %989 = vmatpush1.msra.mxu0 %v899
        %990 = vmatprep.subr.mxu0 0.0
        %991 = vmatpush1.msra.mxu0 %v900
        %992 = vmatprep.subr.mxu0 0.0
        %993 = vmatpush1.msra.mxu0 %v901
        %994 = vmatprep.subr.mxu0 0.0
        %995 = vmatpush1.msra.mxu0 %v902
        %996 = vmatprep.subr.mxu0 0.0
        %997 = vmatpush1.msra.mxu0 %v903
        %998 = vmatprep.subr.mxu0 0.0
        %999 = vmatpush1.msra.mxu0 %v904
        %1000 = vmatprep.subr.mxu0 0.0
        %1001 = vmatpush1.msra.mxu0 %v905
        %1002 = vmatprep.subr.mxu0 0.0
        %1003 = vmatpush1.msra.mxu0 %v906
        %1004 = vmatprep.subr.mxu0 0.0
        %1005 = vmatpush1.msra.mxu0 %v907
        %1006 = vmatprep.subr.mxu0 0.0
        %1007 = vmatpush1.msra.mxu0 %v908
        %1008 = vmatprep.subr.mxu0 0.0
        %1009 = vmatpush1.msra.mxu0 %v909
        %1010 = vmatprep.subr.mxu0 0.0
        %1011 = vmatpush1.msra.mxu0 %v910
        %1012 = vmatprep.subr.mxu0 0.0
        %1013 = vmatpush1.msra.mxu0 %v911
        %1014 = vmatprep.subr.mxu0 0.0
        %1015 = vmatpush1.msra.mxu0 %v912
        %1016 = vmatprep.mubr.f32.mxu0 %v866
        %1017 = vmatmul.mubr.f32.gmra.mrb[0].mxu0 %v865
        %v1018 = vpop.f32.mrb[0].mxu0
        %v1019 = vadd.f32 %v950, %v1018
        %v1020 = vpop.f32.mrb[0].mxu0
        %1021 = vmatprep.mubr.f32.mxu0 %v870
        %1022 = vmatmul.mubr.f32.gmra.mrb[0].mxu0 %v869
        %v1023 = vpop.f32.mrb[0].mxu0
        %v1024 = vadd.f32 %v950, %v1023
        %v1025 = vpop.f32.mrb[0].mxu0
        %1026 = vmatprep.mubr.f32.mxu0 %v874
        %1027 = vmatmul.mubr.f32.gmra.mrb[0].mxu0 %v873
        %v1028 = vpop.f32.mrb[0].mxu0
        %v1029 = vadd.f32 %v950, %v1028
        %v1030 = vpop.f32.mrb[0].mxu0
        %1031 = vmatprep.mubr.f32.mxu0 %v878
        %1032 = vmatmul.mubr.f32.gmra.mrb[0].mxu0 %v877
        %v1033 = vpop.f32.mrb[0].mxu0
        %v1034 = vadd.f32 %v950, %v1033
        %v1035 = vpop.f32.mrb[0].mxu0
        %1036 = vdwg.mxu0
        %1037 = vmatprep.subr.mxu0 0.0
        %1038 = vmatpush1.msra.mxu0 %v913
        %1039 = vmatprep.subr.mxu0 0.0
        %1040 = vmatpush1.msra.mxu0 %v914
        %1041 = vmatprep.subr.mxu0 0.0
        %1042 = vmatpush1.msra.mxu0 %v915
        %1043 = vmatprep.subr.mxu0 0.0
        %1044 = vmatpush1.msra.mxu0 %v916
        %1045 = vmatprep.subr.mxu0 0.0
        %1046 = vmatpush1.msra.mxu0 %v917
        %1047 = vmatprep.subr.mxu0 0.0
        %1048 = vmatpush1.msra.mxu0 %v918
        %1049 = vmatprep.subr.mxu0 0.0
        %1050 = vmatpush1.msra.mxu0 %v919
        %1051 = vmatprep.subr.mxu0 0.0
        %1052 = vmatpush1.msra.mxu0 %v920
        %1053 = vmatprep.subr.mxu0 0.0
        %1054 = vmatpush1.msra.mxu0 %v921
        %1055 = vmatprep.subr.mxu0 0.0
        %1056 = vmatpush1.msra.mxu0 %v922
        %1057 = vmatprep.subr.mxu0 0.0
        %1058 = vmatpush1.msra.mxu0 %v923
        %1059 = vmatprep.subr.mxu0 0.0
        %1060 = vmatpush1.msra.mxu0 %v924
        %1061 = vmatprep.subr.mxu0 0.0
        %1062 = vmatpush1.msra.mxu0 %v925
        %1063 = vmatprep.subr.mxu0 0.0
        %1064 = vmatpush1.msra.mxu0 %v926
        %1065 = vmatprep.subr.mxu0 0.0
        %1066 = vmatpush1.msra.mxu0 %v927
        %1067 = vmatprep.subr.mxu0 0.0
        %1068 = vmatpush1.msra.mxu0 %v928
        %1069 = vmatprep.subr.mxu0 0.0
        %1070 = vmatpush1.msra.mxu0 %v929
        %1071 = vmatprep.subr.mxu0 0.0
        %1072 = vmatpush1.msra.mxu0 %v930
        %1073 = vmatprep.subr.mxu0 0.0
        %1074 = vmatpush1.msra.mxu0 %v931
        %1075 = vmatprep.subr.mxu0 0.0
        %1076 = vmatpush1.msra.mxu0 %v932
        %1077 = vmatprep.subr.mxu0 0.0
        %1078 = vmatpush1.msra.mxu0 %v933
        %1079 = vmatprep.subr.mxu0 0.0
        %1080 = vmatpush1.msra.mxu0 %v934
        %1081 = vmatprep.subr.mxu0 0.0
        %1082 = vmatpush1.msra.mxu0 %v935
        %1083 = vmatprep.subr.mxu0 0.0
        %1084 = vmatpush1.msra.mxu0 %v936
        %1085 = vmatprep.subr.mxu0 0.0
        %1086 = vmatpush1.msra.mxu0 %v937
        %1087 = vmatprep.subr.mxu0 0.0
        %1088 = vmatpush1.msra.mxu0 %v938
        %1089 = vmatprep.subr.mxu0 0.0
        %1090 = vmatpush1.msra.mxu0 %v939
        %1091 = vmatprep.subr.mxu0 0.0
        %1092 = vmatpush1.msra.mxu0 %v940
        %1093 = vmatprep.subr.mxu0 0.0
        %1094 = vmatpush1.msra.mxu0 %v941
        %1095 = vmatprep.subr.mxu0 0.0
        %1096 = vmatpush1.msra.mxu0 %v942
        %1097 = vmatprep.subr.mxu0 0.0
        %1098 = vmatpush1.msra.mxu0 %v943
        %1099 = vmatprep.subr.mxu0 0.0
        %1100 = vmatpush1.msra.mxu0 %v944
        %1101 = vmatprep.mubr.f32.mxu0 %v868
        %1102 = vmatmul.mubr.f32.gmra.mrb[0].mxu0 %v867
        %v1103 = vpop.f32.mrb[0].mxu0
        %v1104 = vadd.f32 %v1019, %v1103
        %v1105 = vpop.f32.mrb[0].mxu0
        %1106 = vmatprep.mubr.f32.mxu0 %v872
        %1107 = vmatmul.mubr.f32.gmra.mrb[0].mxu0 %v871
        %v1108 = vpop.f32.mrb[0].mxu0
        %v1109 = vadd.f32 %v1024, %v1108
        %v1110 = vpop.f32.mrb[0].mxu0
        %1111 = vmatprep.mubr.f32.mxu0 %v876
        %1112 = vmatmul.mubr.f32.gmra.mrb[0].mxu0 %v875
        %v1113 = vpop.f32.mrb[0].mxu0
        %v1114 = vadd.f32 %v1029, %v1113
        %v1115 = vpop.f32.mrb[0].mxu0
        %1116 = vmatprep.mubr.f32.mxu0 %v880
        %1117 = vmatmul.mubr.f32.gmra.mrb[0].mxu0 %v879
        %v1118 = vpop.f32.mrb[0].mxu0
        %v1119 = vadd.f32 %v1034, %v1118
        %v1120 = vpop.f32.mrb[0].mxu0
        %1121 = vdwg.mxu0
        %v1122 = vmul.f32 %v1104, 0.5
        %v1123 = vmul.f32 %v1109, 0.5
        %v1124 = vmul.f32 %v1114, 0.5
        %v1125 = vmul.f32 %v1119, 0.5
        %v1126 = vmul.f32 %v1122, 1.442695
        %v1127 = vpow.pop %v1126
        %v1128 = vmul.f32 %v1123, 1.442695
        %v1129 = vpow.pop %v1128
        %v1130 = vmul.f32 %v1124, 1.442695
        %v1131 = vpow.pop %v1130
        %v1132 = vmul.f32 %v1125, 1.442695
        %v1133 = vpow.pop %v1132
        %1138 = vrot.lane.b32.xlu0 %v1127, 108
        %v1139 = vpop.permute.xlu0 %1138
        %1140 = vrot.lane.b32.xlu0 %v1129, 108
        %v1141 = vpop.permute.xlu0 %1140
        %1142 = vrot.lane.b32.xlu0 %v1131, 108
        %v1143 = vpop.permute.xlu0 %1142
        %1144 = vrot.lane.b32.xlu0 %v1133, 108
        %v1145 = vpop.permute.xlu0 %1144
        %v1150 = vmul.f32 %v350, %v1139
        %v1151 = vmul.f32 %v351, %v1141
        %v1152 = vmul.f32 %v352, %v1143
        %v1153 = vmul.f32 %v353, %v1145
        %1158 = vrot.lane.b32.xlu0 %v1150, 16
        %v1159 = vpop.permute.xlu0 %1158
        %1160 = vrot.lane.b32.xlu0 %v1151, 16
        %v1161 = vpop.permute.xlu0 %1160
        %1162 = vrot.lane.b32.xlu0 %v1152, 16
        %v1163 = vpop.permute.xlu0 %1162
        %1164 = vrot.lane.b32.xlu0 %v1153, 16
        %v1165 = vpop.permute.xlu0 %1164
        %v1170 = vadd.f32 %v1104, %v1159
        %v1171 = vadd.f32 %v1109, %v1161
        %v1172 = vadd.f32 %v1114, %v1163
        %v1173 = vadd.f32 %v1119, %v1165
        %v1174 = vld [vmem:[%s4] sm:$0xff]
        %v1175 = vld [vmem:[%s4 + $0x8] sm:$0xff]
        %1180 = vrot.lane.b32.xlu0 %v1170, 112
        %v1181 = vpop.permute.xlu0 %1180
        %1182 = vrot.lane.b32.xlu0 %v1171, 112
        %v1183 = vpop.permute.xlu0 %1182
        %1184 = vrot.lane.b32.xlu0 %v1172, 112
        %v1185 = vpop.permute.xlu0 %1184
        %1186 = vrot.lane.b32.xlu0 %v1173, 112
        %v1187 = vpop.permute.xlu0 %1186
        %v1190 = vcombine.high %v1174, %v1174
        %v1191 = vcombine.high %v1175, %v1175
        %vm1192 = vcmask 31744
        %v1193 = vsel %vm1192, %v1181, 0
        %v1195 = vsel %vm1192, %v1183, 0
        %v1197 = vsel %vm1192, %v1185, 0
        %v1199 = vsel %vm1192, %v1187, 0
        %vm1201 = vcmask 1043456
        %v1202 = vsel %vm1201, %v1174, 0
        %v1204 = vsel %vm1201, %v1190, 0
        %v1206 = vsel %vm1201, %v1175, 0
        %v1208 = vsel %vm1201, %v1191, 0
        %1210 = vmatprep.subr.mxu0 %v1204
        %1211 = vmatpush1.msra.mxu0 %v1202
        %1212 = vmatprep.subr.mxu0 0.0
        %1213 = vmatpush1.msra.mxu0 0.0
        %1214 = vmatprep.subr.mxu0 0.0
        %1215 = vmatpush1.msra.mxu0 0.0
        %1216 = vmatprep.subr.mxu0 0.0
        %1217 = vmatpush1.msra.mxu0 0.0
        %1218 = vmatprep.subr.mxu0 0.0
        %1219 = vmatpush1.msra.mxu0 0.0
        %1220 = vmatprep.subr.mxu0 0.0
        %1221 = vmatpush1.msra.mxu0 0.0
        %1222 = vmatprep.subr.mxu0 0.0
        %1223 = vmatpush1.msra.mxu0 0.0
        %1224 = vmatprep.subr.mxu0 0.0
        %1225 = vmatpush1.msra.mxu0 0.0
        %1226 = vmatprep.subr.mxu0 0.0
        %1227 = vmatpush1.msra.mxu0 0.0
        %1228 = vmatprep.subr.mxu0 0.0
        %1229 = vmatpush1.msra.mxu0 0.0
        %1230 = vmatprep.subr.mxu0 0.0
        %1231 = vmatpush1.msra.mxu0 0.0
        %1232 = vmatprep.subr.mxu0 0.0
        %1233 = vmatpush1.msra.mxu0 0.0
        %1234 = vmatprep.subr.mxu0 0.0
        %1235 = vmatpush1.msra.mxu0 0.0
        %1236 = vmatprep.subr.mxu0 0.0
        %1237 = vmatpush1.msra.mxu0 0.0
        %1238 = vmatprep.subr.mxu0 0.0
        %1239 = vmatpush1.msra.mxu0 0.0
        %1240 = vmatprep.subr.mxu0 0.0
        %1241 = vmatpush1.msra.mxu0 0.0
        %1242 = vmatprep.subr.mxu0 0.0
        %1243 = vmatpush1.msra.mxu0 0.0
        %1244 = vmatprep.subr.mxu0 0.0
        %1245 = vmatpush1.msra.mxu0 0.0
        %1246 = vmatprep.subr.mxu0 0.0
        %1247 = vmatpush1.msra.mxu0 0.0
        %1248 = vmatprep.subr.mxu0 0.0
        %1249 = vmatpush1.msra.mxu0 0.0
        %1250 = vmatprep.subr.mxu0 0.0
        %1251 = vmatpush1.msra.mxu0 0.0
        %1252 = vmatprep.subr.mxu0 0.0
        %1253 = vmatpush1.msra.mxu0 0.0
        %1254 = vmatprep.subr.mxu0 0.0
        %1255 = vmatpush1.msra.mxu0 0.0
        %1256 = vmatprep.subr.mxu0 0.0
        %1257 = vmatpush1.msra.mxu0 0.0
        %1258 = vmatprep.subr.mxu0 0.0
        %1259 = vmatpush1.msra.mxu0 0.0
        %1260 = vmatprep.subr.mxu0 0.0
        %1261 = vmatpush1.msra.mxu0 0.0
        %1262 = vmatprep.subr.mxu0 0.0
        %1263 = vmatpush1.msra.mxu0 0.0
        %1264 = vmatprep.subr.mxu0 0.0
        %1265 = vmatpush1.msra.mxu0 0.0
        %1266 = vmatprep.subr.mxu0 0.0
        %1267 = vmatpush1.msra.mxu0 0.0
        %1268 = vmatprep.subr.mxu0 0.0
        %1269 = vmatpush1.msra.mxu0 0.0
        %1270 = vmatprep.subr.mxu0 0.0
        %1271 = vmatpush1.msra.mxu0 0.0
        %1272 = vmatprep.subr.mxu0 0.0
        %1273 = vmatpush1.msra.mxu0 0.0
        %1274 = vmatprep.mubr.f32.mxu0 0.0
        %1275 = vmatmul.mubr.f32.gmra.mrb[0].mxu0 %v1193
        %v1276 = vpop.f32.mrb[0].mxu0
        %v1277 = vadd.f32 %v636, %v1276
        %v1278 = vpop.f32.mrb[0].mxu0
        %v1279 = vadd.f32 %v638, %v1278
        %1280 = vmatprep.mubr.f32.mxu0 0.0
        %1281 = vmatmul.mubr.f32.gmra.mrb[0].mxu0 %v1195
        %v1282 = vpop.f32.mrb[0].mxu0
        %v1283 = vadd.f32 %v642, %v1282
        %v1284 = vpop.f32.mrb[0].mxu0
        %v1285 = vadd.f32 %v644, %v1284
        %1286 = vmatprep.mubr.f32.mxu0 0.0
        %1287 = vmatmul.mubr.f32.gmra.mrb[0].mxu0 %v1197
        %v1288 = vpop.f32.mrb[0].mxu0
        %v1289 = vadd.f32 %v648, %v1288
        %v1290 = vpop.f32.mrb[0].mxu0
        %v1291 = vadd.f32 %v650, %v1290
        %1292 = vmatprep.mubr.f32.mxu0 0.0
        %1293 = vmatmul.mubr.f32.gmra.mrb[0].mxu0 %v1199
        %v1294 = vpop.f32.mrb[0].mxu0
        %v1295 = vadd.f32 %v654, %v1294
        %v1296 = vpop.f32.mrb[0].mxu0
        %v1297 = vadd.f32 %v656, %v1296
        %1298 = vdwg.mxu0
        %1299 = vmatprep.subr.mxu0 %v1208
        %1300 = vmatpush1.msra.mxu0 %v1206
        %1301 = vmatprep.subr.mxu0 0.0
        %1302 = vmatpush1.msra.mxu0 0.0
        %1303 = vmatprep.subr.mxu0 0.0
        %1304 = vmatpush1.msra.mxu0 0.0
        %1305 = vmatprep.subr.mxu0 0.0
        %1306 = vmatpush1.msra.mxu0 0.0
        %1307 = vmatprep.subr.mxu0 0.0
        %1308 = vmatpush1.msra.mxu0 0.0
        %1309 = vmatprep.subr.mxu0 0.0
        %1310 = vmatpush1.msra.mxu0 0.0
        %1311 = vmatprep.subr.mxu0 0.0
        %1312 = vmatpush1.msra.mxu0 0.0
        %1313 = vmatprep.subr.mxu0 0.0
        %1314 = vmatpush1.msra.mxu0 0.0
        %1315 = vmatprep.subr.mxu0 0.0
        %1316 = vmatpush1.msra.mxu0 0.0
        %1317 = vmatprep.subr.mxu0 0.0
        %1318 = vmatpush1.msra.mxu0 0.0
        %1319 = vmatprep.subr.mxu0 0.0
        %1320 = vmatpush1.msra.mxu0 0.0
        %1321 = vmatprep.subr.mxu0 0.0
        %1322 = vmatpush1.msra.mxu0 0.0
        %1323 = vmatprep.subr.mxu0 0.0
        %1324 = vmatpush1.msra.mxu0 0.0
        %1325 = vmatprep.subr.mxu0 0.0
        %1326 = vmatpush1.msra.mxu0 0.0
        %1327 = vmatprep.subr.mxu0 0.0
        %1328 = vmatpush1.msra.mxu0 0.0
        %1329 = vmatprep.subr.mxu0 0.0
        %1330 = vmatpush1.msra.mxu0 0.0
        %1331 = vmatprep.subr.mxu0 0.0
        %1332 = vmatpush1.msra.mxu0 0.0
        %1333 = vmatprep.subr.mxu0 0.0
        %1334 = vmatpush1.msra.mxu0 0.0
        %1335 = vmatprep.subr.mxu0 0.0
        %1336 = vmatpush1.msra.mxu0 0.0
        %1337 = vmatprep.subr.mxu0 0.0
        %1338 = vmatpush1.msra.mxu0 0.0
        %1339 = vmatprep.subr.mxu0 0.0
        %1340 = vmatpush1.msra.mxu0 0.0
        %1341 = vmatprep.subr.mxu0 0.0
        %1342 = vmatpush1.msra.mxu0 0.0
        %1343 = vmatprep.subr.mxu0 0.0
        %1344 = vmatpush1.msra.mxu0 0.0
        %1345 = vmatprep.subr.mxu0 0.0
        %1346 = vmatpush1.msra.mxu0 0.0
        %1347 = vmatprep.subr.mxu0 0.0
        %1348 = vmatpush1.msra.mxu0 0.0
        %1349 = vmatprep.subr.mxu0 0.0
        %1350 = vmatpush1.msra.mxu0 0.0
        %1351 = vmatprep.subr.mxu0 0.0
        %1352 = vmatpush1.msra.mxu0 0.0
        %1353 = vmatprep.subr.mxu0 0.0
        %1354 = vmatpush1.msra.mxu0 0.0
        %1355 = vmatprep.subr.mxu0 0.0
        %1356 = vmatpush1.msra.mxu0 0.0
        %1357 = vmatprep.subr.mxu0 0.0
        %1358 = vmatpush1.msra.mxu0 0.0
        %1359 = vmatprep.subr.mxu0 0.0
        %1360 = vmatpush1.msra.mxu0 0.0
        %1361 = vmatprep.subr.mxu0 0.0
        %1362 = vmatpush1.msra.mxu0 0.0
        %1363 = vmatprep.mubr.f32.mxu0 0.0
        %1364 = vmatmul.mubr.f32.gmra.mrb[0].mxu0 %v1193
        %v1365 = vpop.f32.mrb[0].mxu0
        %v1366 = vadd.f32 %v725, %v1365
        %v1367 = vpop.f32.mrb[0].mxu0
        %v1368 = vadd.f32 %v727, %v1367
        %1369 = vmatprep.mubr.f32.mxu0 0.0
        %1370 = vmatmul.mubr.f32.gmra.mrb[0].mxu0 %v1195
        %v1371 = vpop.f32.mrb[0].mxu0
        %v1372 = vadd.f32 %v731, %v1371
        %v1373 = vpop.f32.mrb[0].mxu0
        %v1374 = vadd.f32 %v733, %v1373
        %1375 = vmatprep.mubr.f32.mxu0 0.0
        %1376 = vmatmul.mubr.f32.gmra.mrb[0].mxu0 %v1197
        %v1377 = vpop.f32.mrb[0].mxu0
        %v1378 = vadd.f32 %v737, %v1377
        %v1379 = vpop.f32.mrb[0].mxu0
        %v1380 = vadd.f32 %v739, %v1379
        %1381 = vmatprep.mubr.f32.mxu0 0.0
        %1382 = vmatmul.mubr.f32.gmra.mrb[0].mxu0 %v1199
        %v1383 = vpop.f32.mrb[0].mxu0
        %v1384 = vadd.f32 %v743, %v1383
        %v1385 = vpop.f32.mrb[0].mxu0
        %v1386 = vadd.f32 %v745, %v1385
        %1387 = vdwg.mxu0
        %v1388 = vld [vmem:[%s6 + $0x4] sm:$0xf]
        %v1390 = vlaneseq
        %v1391 = vshrl.u32 %v1390, 7
        %v1392 = vsub.s32 0, %v1391
        %v1393 = vrot.slane %v1388, %v1392
        %v1394 = vlaneseq
        %v1395 = vshrl.u32 %v1394, 7
        %v1396 = vsub.s32 1, %v1395
        %v1397 = vrot.slane %v1388, %v1396
        %v1398 = vlaneseq
        %v1399 = vshrl.u32 %v1398, 7
        %v1400 = vsub.s32 2, %v1399
        %v1401 = vrot.slane %v1388, %v1400
        %v1402 = vlaneseq
        %v1403 = vshrl.u32 %v1402, 7
        %v1404 = vsub.s32 3, %v1403
        %v1405 = vrot.slane %v1388, %v1404
        %v1410 = vadd.f32 %v1277, %v1393
        %v1411 = vadd.f32 %v1279, %v1397
        %v1412 = vadd.f32 %v1366, %v1401
        %v1413 = vadd.f32 %v1368, %v1405
        %v1414 = vadd.f32 %v1283, %v1393
        %v1415 = vadd.f32 %v1285, %v1397
        %v1416 = vadd.f32 %v1372, %v1401
        %v1417 = vadd.f32 %v1374, %v1405
        %v1418 = vadd.f32 %v1289, %v1393
        %v1419 = vadd.f32 %v1291, %v1397
        %v1420 = vadd.f32 %v1378, %v1401
        %v1421 = vadd.f32 %v1380, %v1405
        %v1422 = vadd.f32 %v1295, %v1393
        %v1423 = vadd.f32 %v1297, %v1397
        %v1424 = vadd.f32 %v1384, %v1401
        %v1425 = vadd.f32 %v1386, %v1405
        %vm1426 = vcmp.gt.f32.partialorder %v1410, 0.0
        %vm1427 = vcmp.gt.f32.partialorder %v1411, 0.0
        %vm1428 = vcmp.gt.f32.partialorder %v1412, 0.0
        %vm1429 = vcmp.gt.f32.partialorder %v1413, 0.0
        %vm1430 = vcmp.gt.f32.partialorder %v1414, 0.0
        %vm1431 = vcmp.gt.f32.partialorder %v1415, 0.0
        %vm1432 = vcmp.gt.f32.partialorder %v1416, 0.0
        %vm1433 = vcmp.gt.f32.partialorder %v1417, 0.0
        %vm1434 = vcmp.gt.f32.partialorder %v1418, 0.0
        %vm1435 = vcmp.gt.f32.partialorder %v1419, 0.0
        %vm1436 = vcmp.gt.f32.partialorder %v1420, 0.0
        %vm1437 = vcmp.gt.f32.partialorder %v1421, 0.0
        %vm1438 = vcmp.gt.f32.partialorder %v1422, 0.0
        %vm1439 = vcmp.gt.f32.partialorder %v1423, 0.0
        %vm1440 = vcmp.gt.f32.partialorder %v1424, 0.0
        %vm1441 = vcmp.gt.f32.partialorder %v1425, 0.0
        %v1442 = vmin.f32 %v1410, 0.0
        %v1443 = vmin.f32 %v1411, 0.0
        %v1444 = vmin.f32 %v1412, 0.0
        %v1445 = vmin.f32 %v1413, 0.0
        %v1446 = vmin.f32 %v1414, 0.0
        %v1447 = vmin.f32 %v1415, 0.0
        %v1448 = vmin.f32 %v1416, 0.0
        %v1449 = vmin.f32 %v1417, 0.0
        %v1450 = vmin.f32 %v1418, 0.0
        %v1451 = vmin.f32 %v1419, 0.0
        %v1452 = vmin.f32 %v1420, 0.0
        %v1453 = vmin.f32 %v1421, 0.0
        %v1454 = vmin.f32 %v1422, 0.0
        %v1455 = vmin.f32 %v1423, 0.0
        %v1456 = vmin.f32 %v1424, 0.0
        %v1457 = vmin.f32 %v1425, 0.0
        %v1458 = vmul.f32 %v1442, 1.442695
        %v1459 = vpow.pop %v1458
        %v1460 = vmul.f32 %v1443, 1.442695
        %v1461 = vpow.pop %v1460
        %v1462 = vmul.f32 %v1444, 1.442695
        %v1463 = vpow.pop %v1462
        %v1464 = vmul.f32 %v1445, 1.442695
        %v1465 = vpow.pop %v1464
        %v1466 = vmul.f32 %v1446, 1.442695
        %v1467 = vpow.pop %v1466
        %v1468 = vmul.f32 %v1447, 1.442695
        %v1469 = vpow.pop %v1468
        %v1470 = vmul.f32 %v1448, 1.442695
        %v1471 = vpow.pop %v1470
        %v1472 = vmul.f32 %v1449, 1.442695
        %v1473 = vpow.pop %v1472
        %v1474 = vmul.f32 %v1450, 1.442695
        %v1475 = vpow.pop %v1474
        %v1476 = vmul.f32 %v1451, 1.442695
        %v1477 = vpow.pop %v1476
        %v1478 = vmul.f32 %v1452, 1.442695
        %v1479 = vpow.pop %v1478
        %v1480 = vmul.f32 %v1453, 1.442695
        %v1481 = vpow.pop %v1480
        %v1482 = vmul.f32 %v1454, 1.442695
        %v1483 = vpow.pop %v1482
        %v1484 = vmul.f32 %v1455, 1.442695
        %v1485 = vpow.pop %v1484
        %v1486 = vmul.f32 %v1456, 1.442695
        %v1487 = vpow.pop %v1486
        %v1488 = vmul.f32 %v1457, 1.442695
        %v1489 = vpow.pop %v1488
        %v1490 = vsub.f32 %v1459, 1.0
        %v1491 = vsub.f32 %v1461, 1.0
        %v1492 = vsub.f32 %v1463, 1.0
        %v1493 = vsub.f32 %v1465, 1.0
        %v1494 = vsub.f32 %v1467, 1.0
        %v1495 = vsub.f32 %v1469, 1.0
        %v1496 = vsub.f32 %v1471, 1.0
        %v1497 = vsub.f32 %v1473, 1.0
        %v1498 = vsub.f32 %v1475, 1.0
        %v1499 = vsub.f32 %v1477, 1.0
        %v1500 = vsub.f32 %v1479, 1.0
        %v1501 = vsub.f32 %v1481, 1.0
        %v1502 = vsub.f32 %v1483, 1.0
        %v1503 = vsub.f32 %v1485, 1.0
        %v1504 = vsub.f32 %v1487, 1.0
        %v1505 = vsub.f32 %v1489, 1.0
        %v1506 = vsel %vm1426, %v1410, %v1490
        %v1507 = vsel %vm1427, %v1411, %v1491
        %v1508 = vsel %vm1428, %v1412, %v1492
        %v1509 = vsel %vm1429, %v1413, %v1493
        %v1510 = vsel %vm1430, %v1414, %v1494
        %v1511 = vsel %vm1431, %v1415, %v1495
        %v1512 = vsel %vm1432, %v1416, %v1496
        %v1513 = vsel %vm1433, %v1417, %v1497
        %v1514 = vsel %vm1434, %v1418, %v1498
        %v1515 = vsel %vm1435, %v1419, %v1499
        %v1516 = vsel %vm1436, %v1420, %v1500
        %v1517 = vsel %vm1437, %v1421, %v1501
        %v1518 = vsel %vm1438, %v1422, %v1502
        %v1519 = vsel %vm1439, %v1423, %v1503
        %v1520 = vsel %vm1440, %v1424, %v1504
        %v1521 = vsel %vm1441, %v1425, %v1505
        %v1522 = vld [vmem:[#allocation7] sm:$0xff]
        %v1523 = vld [vmem:[#allocation7 + $0x8] sm:$0xff]
        %v1524 = vld [vmem:[#allocation7 + $0x10] sm:$0xff]
        %v1525 = vld [vmem:[#allocation7 + $0x18] sm:$0xff]
        %v1526 = vld [vmem:[#allocation7 + $0x20] sm:$0xff]
        %v1527 = vld [vmem:[#allocation7 + $0x28] sm:$0xff]
        %v1528 = vld [vmem:[#allocation7 + $0x30] sm:$0xff]
        %v1529 = vld [vmem:[#allocation7 + $0x38] sm:$0xff]
        %v1530 = vld [vmem:[#allocation7 + $0x40] sm:$0xff]
        %v1531 = vld [vmem:[#allocation7 + $0x48] sm:$0xff]
        %v1532 = vld [vmem:[#allocation7 + $0x50] sm:$0xff]
        %v1533 = vld [vmem:[#allocation7 + $0x58] sm:$0xff]
        %v1534 = vld [vmem:[#allocation7 + $0x60] sm:$0xff]
        %v1535 = vld [vmem:[#allocation7 + $0x68] sm:$0xff]
        %v1536 = vld [vmem:[#allocation7 + $0x70] sm:$0xff]
        %v1537 = vld [vmem:[#allocation7 + $0x78] sm:$0xff]
        %v1538 = vld [vmem:[#allocation7 + $0x80] sm:$0xff]
        %v1539 = vld [vmem:[#allocation7 + $0x88] sm:$0xff]
        %v1540 = vld [vmem:[#allocation7 + $0x90] sm:$0xff]
        %v1541 = vld [vmem:[#allocation7 + $0x98] sm:$0xff]
        %v1542 = vld [vmem:[#allocation7 + $0xa0] sm:$0xff]
        %v1543 = vld [vmem:[#allocation7 + $0xa8] sm:$0xff]
        %v1544 = vld [vmem:[#allocation7 + $0xb0] sm:$0xff]
        %v1545 = vld [vmem:[#allocation7 + $0xb8] sm:$0xff]
        %v1546 = vld [vmem:[#allocation7 + $0xc0] sm:$0xff]
        %v1547 = vld [vmem:[#allocation7 + $0xc8] sm:$0xff]
        %v1548 = vld [vmem:[#allocation7 + $0xd0] sm:$0xff]
        %v1549 = vld [vmem:[#allocation7 + $0xd8] sm:$0xff]
        %v1550 = vld [vmem:[#allocation7 + $0xe0] sm:$0xff]
        %v1551 = vld [vmem:[#allocation7 + $0xe8] sm:$0xff]
        %v1552 = vld [vmem:[#allocation7 + $0xf0] sm:$0xff]
        %v1553 = vld [vmem:[#allocation7 + $0xf8] sm:$0xff]
        %v1554 = vld [vmem:[#allocation7 + $0x100] sm:$0xff]
        %v1555 = vld [vmem:[#allocation7 + $0x108] sm:$0xff]
        %v1556 = vld [vmem:[#allocation7 + $0x110] sm:$0xff]
        %v1557 = vld [vmem:[#allocation7 + $0x118] sm:$0xff]
        %v1558 = vld [vmem:[#allocation7 + $0x120] sm:$0xff]
        %v1559 = vld [vmem:[#allocation7 + $0x128] sm:$0xff]
        %v1560 = vld [vmem:[#allocation7 + $0x130] sm:$0xff]
        %v1561 = vld [vmem:[#allocation7 + $0x138] sm:$0xff]
        %v1562 = vld [vmem:[#allocation7 + $0x140] sm:$0xff]
        %v1563 = vld [vmem:[#allocation7 + $0x148] sm:$0xff]
        %v1564 = vld [vmem:[#allocation7 + $0x150] sm:$0xff]
        %v1565 = vld [vmem:[#allocation7 + $0x158] sm:$0xff]
        %v1566 = vld [vmem:[#allocation7 + $0x160] sm:$0xff]
        %v1567 = vld [vmem:[#allocation7 + $0x168] sm:$0xff]
        %v1568 = vld [vmem:[#allocation7 + $0x170] sm:$0xff]
        %v1569 = vld [vmem:[#allocation7 + $0x178] sm:$0xff]
        %v1570 = vld [vmem:[#allocation7 + $0x180] sm:$0xff]
        %v1571 = vld [vmem:[#allocation7 + $0x188] sm:$0xff]
        %v1572 = vld [vmem:[#allocation7 + $0x190] sm:$0xff]
        %v1573 = vld [vmem:[#allocation7 + $0x198] sm:$0xff]
        %v1574 = vld [vmem:[#allocation7 + $0x1a0] sm:$0xff]
        %v1575 = vld [vmem:[#allocation7 + $0x1a8] sm:$0xff]
        %v1576 = vld [vmem:[#allocation7 + $0x1b0] sm:$0xff]
        %v1577 = vld [vmem:[#allocation7 + $0x1b8] sm:$0xff]
        %v1578 = vld [vmem:[#allocation7 + $0x1c0] sm:$0xff]
        %v1579 = vld [vmem:[#allocation7 + $0x1c8] sm:$0xff]
        %v1580 = vld [vmem:[#allocation7 + $0x1d0] sm:$0xff]
        %v1581 = vld [vmem:[#allocation7 + $0x1d8] sm:$0xff]
        %v1582 = vld [vmem:[#allocation7 + $0x1e0] sm:$0xff]
        %v1583 = vld [vmem:[#allocation7 + $0x1e8] sm:$0xff]
        %v1584 = vld [vmem:[#allocation7 + $0x1f0] sm:$0xff]
        %v1585 = vld [vmem:[#allocation7 + $0x1f8] sm:$0xff]
        %1586 = vmatprep.subr.mxu0 0.0
        %1587 = vmatpush1.msra.mxu0 %v1522
        %1588 = vmatprep.subr.mxu0 0.0
        %1589 = vmatpush1.msra.mxu0 %v1523
        %1590 = vmatprep.subr.mxu0 0.0
        %1591 = vmatpush1.msra.mxu0 %v1524
        %1592 = vmatprep.subr.mxu0 0.0
        %1593 = vmatpush1.msra.mxu0 %v1525
        %1594 = vmatprep.subr.mxu0 0.0
        %1595 = vmatpush1.msra.mxu0 %v1526
        %1596 = vmatprep.subr.mxu0 0.0
        %1597 = vmatpush1.msra.mxu0 %v1527
        %1598 = vmatprep.subr.mxu0 0.0
        %1599 = vmatpush1.msra.mxu0 %v1528
        %1600 = vmatprep.subr.mxu0 0.0
        %1601 = vmatpush1.msra.mxu0 %v1529
        %1602 = vmatprep.subr.mxu0 0.0
        %1603 = vmatpush1.msra.mxu0 %v1530
        %1604 = vmatprep.subr.mxu0 0.0
        %1605 = vmatpush1.msra.mxu0 %v1531
        %1606 = vmatprep.subr.mxu0 0.0
        %1607 = vmatpush1.msra.mxu0 %v1532
        %1608 = vmatprep.subr.mxu0 0.0
        %1609 = vmatpush1.msra.mxu0 %v1533
        %1610 = vmatprep.subr.mxu0 0.0
        %1611 = vmatpush1.msra.mxu0 %v1534
        %1612 = vmatprep.subr.mxu0 0.0
        %1613 = vmatpush1.msra.mxu0 %v1535
        %1614 = vmatprep.subr.mxu0 0.0
        %1615 = vmatpush1.msra.mxu0 %v1536
        %1616 = vmatprep.subr.mxu0 0.0
        %1617 = vmatpush1.msra.mxu0 %v1537
        %1618 = vmatprep.subr.mxu0 0.0
        %1619 = vmatpush1.msra.mxu0 %v1538
        %1620 = vmatprep.subr.mxu0 0.0
        %1621 = vmatpush1.msra.mxu0 %v1539
        %1622 = vmatprep.subr.mxu0 0.0
        %1623 = vmatpush1.msra.mxu0 %v1540
        %1624 = vmatprep.subr.mxu0 0.0
        %1625 = vmatpush1.msra.mxu0 %v1541
        %1626 = vmatprep.subr.mxu0 0.0
        %1627 = vmatpush1.msra.mxu0 %v1542
        %1628 = vmatprep.subr.mxu0 0.0
        %1629 = vmatpush1.msra.mxu0 %v1543
        %1630 = vmatprep.subr.mxu0 0.0
        %1631 = vmatpush1.msra.mxu0 %v1544
        %1632 = vmatprep.subr.mxu0 0.0
        %1633 = vmatpush1.msra.mxu0 %v1545
        %1634 = vmatprep.subr.mxu0 0.0
        %1635 = vmatpush1.msra.mxu0 %v1546
        %1636 = vmatprep.subr.mxu0 0.0
        %1637 = vmatpush1.msra.mxu0 %v1547
        %1638 = vmatprep.subr.mxu0 0.0
        %1639 = vmatpush1.msra.mxu0 %v1548
        %1640 = vmatprep.subr.mxu0 0.0
        %1641 = vmatpush1.msra.mxu0 %v1549
        %1642 = vmatprep.subr.mxu0 0.0
        %1643 = vmatpush1.msra.mxu0 %v1550
        %1644 = vmatprep.subr.mxu0 0.0
        %1645 = vmatpush1.msra.mxu0 %v1551
        %1646 = vmatprep.subr.mxu0 0.0
        %1647 = vmatpush1.msra.mxu0 %v1552
        %1648 = vmatprep.subr.mxu0 0.0
        %1649 = vmatpush1.msra.mxu0 %v1553
        %1650 = vmatprep.mubr.f32.mxu0 %v1507
        %1651 = vmatmul.mubr.f32.gmra.mrb[0].mxu0 %v1506
        %v1652 = vpop.f32.mrb[0].mxu0
        %v1653 = vadd.f32 %v1104, %v1652
        %v1654 = vpop.f32.mrb[0].mxu0
        %1655 = vmatprep.mubr.f32.mxu0 %v1511
        %1656 = vmatmul.mubr.f32.gmra.mrb[0].mxu0 %v1510
        %v1657 = vpop.f32.mrb[0].mxu0
        %v1658 = vadd.f32 %v1109, %v1657
        %v1659 = vpop.f32.mrb[0].mxu0
        %1660 = vmatprep.mubr.f32.mxu0 %v1515
        %1661 = vmatmul.mubr.f32.gmra.mrb[0].mxu0 %v1514
        %v1662 = vpop.f32.mrb[0].mxu0
        %v1663 = vadd.f32 %v1114, %v1662
        %v1664 = vpop.f32.mrb[0].mxu0
        %1665 = vmatprep.mubr.f32.mxu0 %v1519
        %1666 = vmatmul.mubr.f32.gmra.mrb[0].mxu0 %v1518
        %v1667 = vpop.f32.mrb[0].mxu0
        %v1668 = vadd.f32 %v1119, %v1667
        %v1669 = vpop.f32.mrb[0].mxu0
        %1670 = vdwg.mxu0
        %1671 = vmatprep.subr.mxu0 0.0
        %1672 = vmatpush1.msra.mxu0 %v1554
        %1673 = vmatprep.subr.mxu0 0.0
        %1674 = vmatpush1.msra.mxu0 %v1555
        %1675 = vmatprep.subr.mxu0 0.0
        %1676 = vmatpush1.msra.mxu0 %v1556
        %1677 = vmatprep.subr.mxu0 0.0
        %1678 = vmatpush1.msra.mxu0 %v1557
        %1679 = vmatprep.subr.mxu0 0.0
        %1680 = vmatpush1.msra.mxu0 %v1558
        %1681 = vmatprep.subr.mxu0 0.0
        %1682 = vmatpush1.msra.mxu0 %v1559
        %1683 = vmatprep.subr.mxu0 0.0
        %1684 = vmatpush1.msra.mxu0 %v1560
        %1685 = vmatprep.subr.mxu0 0.0
        %1686 = vmatpush1.msra.mxu0 %v1561
        %1687 = vmatprep.subr.mxu0 0.0
        %1688 = vmatpush1.msra.mxu0 %v1562
        %1689 = vmatprep.subr.mxu0 0.0
        %1690 = vmatpush1.msra.mxu0 %v1563
        %1691 = vmatprep.subr.mxu0 0.0
        %1692 = vmatpush1.msra.mxu0 %v1564
        %1693 = vmatprep.subr.mxu0 0.0
        %1694 = vmatpush1.msra.mxu0 %v1565
        %1695 = vmatprep.subr.mxu0 0.0
        %1696 = vmatpush1.msra.mxu0 %v1566
        %1697 = vmatprep.subr.mxu0 0.0
        %1698 = vmatpush1.msra.mxu0 %v1567
        %1699 = vmatprep.subr.mxu0 0.0
        %1700 = vmatpush1.msra.mxu0 %v1568
        %1701 = vmatprep.subr.mxu0 0.0
        %1702 = vmatpush1.msra.mxu0 %v1569
        %1703 = vmatprep.subr.mxu0 0.0
        %1704 = vmatpush1.msra.mxu0 %v1570
        %1705 = vmatprep.subr.mxu0 0.0
        %1706 = vmatpush1.msra.mxu0 %v1571
        %1707 = vmatprep.subr.mxu0 0.0
        %1708 = vmatpush1.msra.mxu0 %v1572
        %1709 = vmatprep.subr.mxu0 0.0
        %1710 = vmatpush1.msra.mxu0 %v1573
        %1711 = vmatprep.subr.mxu0 0.0
        %1712 = vmatpush1.msra.mxu0 %v1574
        %1713 = vmatprep.subr.mxu0 0.0
        %1714 = vmatpush1.msra.mxu0 %v1575
        %1715 = vmatprep.subr.mxu0 0.0
        %1716 = vmatpush1.msra.mxu0 %v1576
        %1717 = vmatprep.subr.mxu0 0.0
        %1718 = vmatpush1.msra.mxu0 %v1577
        %1719 = vmatprep.subr.mxu0 0.0
        %1720 = vmatpush1.msra.mxu0 %v1578
        %1721 = vmatprep.subr.mxu0 0.0
        %1722 = vmatpush1.msra.mxu0 %v1579
        %1723 = vmatprep.subr.mxu0 0.0
        %1724 = vmatpush1.msra.mxu0 %v1580
        %1725 = vmatprep.subr.mxu0 0.0
        %1726 = vmatpush1.msra.mxu0 %v1581
        %1727 = vmatprep.subr.mxu0 0.0
        %1728 = vmatpush1.msra.mxu0 %v1582
        %1729 = vmatprep.subr.mxu0 0.0
        %1730 = vmatpush1.msra.mxu0 %v1583
        %1731 = vmatprep.subr.mxu0 0.0
        %1732 = vmatpush1.msra.mxu0 %v1584
        %1733 = vmatprep.subr.mxu0 0.0
        %1734 = vmatpush1.msra.mxu0 %v1585
        %1735 = vmatprep.mubr.f32.mxu0 %v1509
        %1736 = vmatmul.mubr.f32.gmra.mrb[0].mxu0 %v1508
        %v1737 = vpop.f32.mrb[0].mxu0
        %v1738 = vadd.f32 %v1653, %v1737
        %v1739 = vpop.f32.mrb[0].mxu0
        %1740 = vmatprep.mubr.f32.mxu0 %v1513
        %1741 = vmatmul.mubr.f32.gmra.mrb[0].mxu0 %v1512
        %v1742 = vpop.f32.mrb[0].mxu0
        %v1743 = vadd.f32 %v1658, %v1742
        %v1744 = vpop.f32.mrb[0].mxu0
        %1745 = vmatprep.mubr.f32.mxu0 %v1517
        %1746 = vmatmul.mubr.f32.gmra.mrb[0].mxu0 %v1516
        %v1747 = vpop.f32.mrb[0].mxu0
        %v1748 = vadd.f32 %v1663, %v1747
        %v1749 = vpop.f32.mrb[0].mxu0
        %1750 = vmatprep.mubr.f32.mxu0 %v1521
        %1751 = vmatmul.mubr.f32.gmra.mrb[0].mxu0 %v1520
        %v1752 = vpop.f32.mrb[0].mxu0
        %v1753 = vadd.f32 %v1668, %v1752
        %v1754 = vpop.f32.mrb[0].mxu0
        %1755 = vdwg.mxu0
        %1756 = vst [vmem:[%s332] sm:$0xff] %v1738
        %1757 = vst [vmem:[%s332 + $0x8] sm:$0xff] %v1743
        %1758 = vst [vmem:[%s332 + $0x10] sm:$0xff] %v1748
        %1759 = vst [vmem:[%s332 + $0x18] sm:$0xff] %v1753
        %s1760 = sand.u32 %s188, 1
        %s1761 = scalar_lea.sflag [#allocation4], %s1760
        %s1762 = sand.u32 %s188, 1
        %s1763 = smul.addr %s1762, 32
        %s1764 = scalar_lea.vmem [#allocation8], %s1763
        // Predicated region
        $region61: #{tpu_custom_call.1} parent=47 // pred_check
          %p1765 = pneg %p198
        $region62: #{tpu_custom_call.1} parent=47 // pred_check_branch
          %1767 = sbr.rel (%p1765) target = $region64
        $region63: #{tpu_custom_call.1} parent=47 // pred_region
          %s1768 = smul.u32 4, %s23
          %s1770 = ssub.s32 512, 512
          %1771 = vsyncadd %s1761, %s1770
          %s1772 = smul.addr %s1768, 128
          %s1773 = scalar_lea.hbm %s7, %s1772
          %s1774 = sshll.u32 %s1764, 4
          %s1775 = int_to_ptr.vmem [resolvable:$true] %s1774
          %1780 = dma.vmem_to_hbm [thread:$0]  %s1775, 512, %s1773, %s1761, 128, 128, 8
        $region64: #{tpu_custom_call.1} parent=47 // pred_fallthru
          _
      $region48: #{tpu_custom_call.1} parent=5 // pred_fallthru
        _
      %p1781 = scmp.le.s32.totalorder 2, %s18
      // Predicated region
      $region65: #{tpu_custom_call.1} parent=5 // pred_check
        %p1782 = pneg %p1781
      $region66: #{tpu_custom_call.1} parent=5 // pred_check_branch
        %1784 = sbr.rel (%p1782) target = $region68
      $region67: #{tpu_custom_call.1} parent=5 // pred_region
        %s1785 = ssub.s32 %s18, 2
        // Predicated region
        $region69: #{tpu_custom_call.1} parent=67 // pred_check
          %p1786 = pneg %p204
        $region70: #{tpu_custom_call.1} parent=67 // pred_check_branch
          %1788 = sbr.rel (%p1786) target = $region72
        $region71: #{tpu_custom_call.1} parent=67 // pred_region
          %s1789 = sand.u32 %s189, 1
          %s1790 = scalar_lea.sflag [#allocation4], %s1789
          %s1791 = sand.u32 %s189, 1
          %s1792 = smul.addr %s1791, 32
          %s1793 = scalar_lea.vmem [#allocation8], %s1792
          %1794 = dma.done %s1790, 512
        $region72: #{tpu_custom_call.1} parent=67 // pred_fallthru
          _
      $region68: #{tpu_custom_call.1} parent=5 // pred_fallthru
        _
    $region6: #{tpu_custom_call.1} parent=1 // loop_footer
      %s22 = sadd.s32 1, %s18
    $region7: #{tpu_custom_call.1} parent=1 // loop_footer_branch
      %17 = sbr.rel target = $region3
    $region8: #{tpu_custom_call.1} parent=1 // loop_exit
      _
    %1795 = vsyncpa [#allocation3], 1
    %s1796 = scalar_lea.sflag [#allocation3], 1
    %1797 = vsyncpa %s1796, 1
    %1798 = vsyncpa [#allocation6], 1
    %1799 = vsyncpa [#allocation4], 1
    %s1800 = scalar_lea.sflag [#allocation4], 1
    %1801 = vsyncpa %s1800, 1

</llo_original>
